<compile_context>
chip_gen: v7x
topology: tpu7x:2x2x1
jax: 0.10.0
libtpu: 0.0.40
codegen_flags: <defaults>
</compile_context>

<pallas_src>
import functools

import jax
import jax.numpy as jnp
from jax import lax
from jax.experimental import pallas as pl
from jax.experimental.pallas import tpu as pltpu


def attention_kernel(x_ref, wq_ref, wk_ref, wv_ref, wo_ref, o_ref, z_ref,
                     *, num_heads, d_head):
    x = x_ref[...]                                   # (P, D)
    P = x.shape[0]
    scale = 1.0 / (float(d_head) ** 0.5)             # static Python constant

    # Fused QKV projections: one matmul each, N = H*d_head lanes.
    # (Scale folded into q; masked logits go to -1e10 either way.)
    q_all = jnp.dot(x, wq_ref[...], preferred_element_type=jnp.float32) * scale
    k_all = jnp.dot(x, wk_ref[...], preferred_element_type=jnp.float32)
    v_all = jnp.dot(x, wv_ref[...], preferred_element_type=jnp.float32)

    # Causal mask: rows = query positions, cols = key positions.
    q_idx = lax.broadcasted_iota(jnp.int32, (P, P), 0)
    p_idx = lax.broadcasted_iota(jnp.int32, (P, P), 1)
    causal = p_idx <= q_idx

    # H is small and static -> unrolled Python loop over heads.
    for i in range(num_heads):
        lo = i * d_head
        hi = lo + d_head
        q = q_all[:, lo:hi]                          # (P, dh)
        k = k_all[:, lo:hi]
        v = v_all[:, lo:hi]

        # scores[a, b] = sum_h q[a, h] * k[b, h]  (no in-kernel transpose).
        scores = lax.dot_general(q, k, (((1,), (1,)), ((), ())),
                                 preferred_element_type=jnp.float32)
        scores = jnp.where(causal, scores, jnp.float32(-1e10))

        # Softmax over the key axis (f32 throughout).
        scores = scores - jnp.max(scores, axis=-1, keepdims=True)
        e = jnp.exp(scores)
        denom = jnp.sum(e, axis=-1, keepdims=True)
        attn = e * pl.reciprocal(denom, approx=True)

        # Head output -> static lane slice of the (P, H*dh) VMEM slab.
        z_ref[:, lo:hi] = jnp.dot(attn, v, preferred_element_type=jnp.float32)

    # Single fused output projection: (P, H*dh) @ (H*dh, D).
    o_ref[...] = jnp.dot(z_ref[...], wo_ref[...],
                         preferred_element_type=jnp.float32).astype(o_ref.dtype)


def attention_forward(x, W_Q, W_K, W_V, W_O):
    B, P, D = x.shape
    H, dh, _ = W_Q.shape
    F = H * dh

    # Pre-pack weights so the kernel never transposes:
    #   q_all = x @ wq_all, with q_all[:, i*dh:(i+1)*dh] == x @ W_Q[i].T
    def pack(w):                                     # (H, dh, D) -> (D, H*dh)
        return jnp.transpose(w, (2, 0, 1)).reshape(D, F)

    wq_all = pack(W_Q)
    wk_all = pack(W_K)
    wv_all = pack(W_V)
    wo_t = jnp.transpose(W_O)                        # (H*dh, D)

    kernel = functools.partial(attention_kernel, num_heads=H, d_head=dh)
    return pl.pallas_call(
        kernel,
        out_shape=jax.ShapeDtypeStruct((B, P, D), x.dtype),
        grid=(B,),
        in_specs=[
            pl.BlockSpec((None, P, D), lambda b: (b, 0, 0)),  # x: one batch row
            pl.BlockSpec((D, F), lambda b: (0, 0)),           # W_Q packed
            pl.BlockSpec((D, F), lambda b: (0, 0)),           # W_K packed
            pl.BlockSpec((D, F), lambda b: (0, 0)),           # W_V packed
            pl.BlockSpec((F, D), lambda b: (0, 0)),           # W_O^T
        ],
        out_specs=pl.BlockSpec((None, P, D), lambda b: (b, 0, 0)),
        scratch_shapes=[pltpu.VMEM((P, F), jnp.float32)],     # z_all slab
        compiler_params=pltpu.CompilerParams(
            dimension_semantics=("parallel",)),
    )(x, wq_all, wk_all, wv_all, wo_t)


def reference_forward(x, W_Q, W_K, W_V, W_O, d_head):
    """Pure-JAX transcription of the PyTorch forward, for verification."""
    k = jnp.einsum('ihd,bpd->biph', W_K, x)
    q = jnp.einsum('ihd,bpd->biph', W_Q, x)
    v = jnp.einsum('ihd,bpd->biph', W_V, x)
    scores = jnp.einsum('biph,biqh->biqp', k, q)
    P = x.shape[1]
    mask = jnp.tril(jnp.ones((P, P), x.dtype))
    masked = jnp.tril(scores) - 1e10 * (1.0 - mask)
    attn = jax.nn.softmax(masked / jnp.sqrt(jnp.float32(d_head)), axis=-1)
    z = jnp.einsum('biph,biqp->biqh', v, attn)
    B = x.shape[0]
    z_flat = jnp.transpose(z, (0, 2, 1, 3)).reshape(B, P, -1)   # b q (i h)
    return jnp.einsum('df,bqf->bqd', W_O, z_flat)


if __name__ == "__main__":
    # Small, consistent shapes: batch=2, seq (= n_ctx) = 8, d_model=32,
    # num_heads=4, d_head=8.
    B, P, D, H, dh = 2, 8, 32, 4, 8

    key = jax.random.PRNGKey(0)
    kx, kq, kk, kv, ko = jax.random.split(key, 5)

    x = jax.random.normal(kx, (B, P, D), dtype=jnp.float32)
    scale = 1.0 / jnp.sqrt(jnp.float32(D))
    W_Q = jax.random.normal(kq, (H, dh, D), dtype=jnp.float32) * scale
    W_K = jax.random.normal(kk, (H, dh, D), dtype=jnp.float32) * scale
    W_V = jax.random.normal(kv, (H, dh, D), dtype=jnp.float32) * scale
    W_O = jax.random.normal(ko, (D, H * dh), dtype=jnp.float32) * scale

    out = attention_forward(x, W_Q, W_K, W_V, W_O)
    out = jax.block_until_ready(out)

    ref = reference_forward(x, W_Q, W_K, W_V, W_O, dh)
    ref = jax.block_until_ready(ref)

    assert out.shape == (B, P, D), out.shape
    # Tolerance loosened slightly vs. 1e-4 because the softmax denominator
    # uses the approximate EUP reciprocal (pl.reciprocal(approx=True));
    # structural bugs (wrong mask / projection) would produce O(0.1-1) errors.
    max_err = float(jnp.max(jnp.abs(out - ref)))
    assert max_err < 1e-2, f"max abs error {max_err}"

    print("KERNEL_OK")
</pallas_src>

<mosaic_0001>
module attributes {stable_mosaic.version = 11 : i64} {
  func.func @attention_kernel(%arg0: i32, %arg1: memref<1x8x32xf32, #tpu.memory_space<vmem>>, %arg2: memref<32x32xf32, #tpu.memory_space<vmem>>, %arg3: memref<32x32xf32, #tpu.memory_space<vmem>>, %arg4: memref<32x32xf32, #tpu.memory_space<vmem>>, %arg5: memref<32x32xf32, #tpu.memory_space<vmem>>, %arg6: memref<1x8x32xf32, #tpu.memory_space<vmem>>, %arg7: memref<8x32xf32, #tpu.memory_space<vmem>>) attributes {dimension_semantics = [#tpu.dimension_semantics<parallel>], iteration_bounds = array<i64: 2>, scalar_prefetch = 0 : i64, scratch_operands = 1 : i64, tpu.core_type = #tpu.core_type<tc>, window_params = [{transform_indices = @transform_0, window_bounds = array<i64: 1, 8, 32>}, {pipeline_mode = #tpu.pipeline_mode<synchronous>, transform_indices = @transform_1, window_bounds = array<i64: 32, 32>}, {pipeline_mode = #tpu.pipeline_mode<synchronous>, transform_indices = @transform_2, window_bounds = array<i64: 32, 32>}, {pipeline_mode = #tpu.pipeline_mode<synchronous>, transform_indices = @transform_3, window_bounds = array<i64: 32, 32>}, {pipeline_mode = #tpu.pipeline_mode<synchronous>, transform_indices = @transform_4, window_bounds = array<i64: 32, 32>}, {transform_indices = @transform_5, window_bounds = array<i64: 1, 8, 32>}]} {
    %c0 = arith.constant 0 : index
    %c0_0 = arith.constant 0 : index
    %c0_1 = arith.constant 0 : index
    %0 = vector.load %arg1[%c0, %c0_0, %c0_1] : memref<1x8x32xf32, #tpu.memory_space<vmem>>, vector<1x8x32xf32>
    %1 = vector.shape_cast %0 : vector<1x8x32xf32> to vector<8x32xf32>
    %c0_2 = arith.constant 0 : index
    %c0_3 = arith.constant 0 : index
    %2 = vector.load %arg2[%c0_2, %c0_3] : memref<32x32xf32, #tpu.memory_space<vmem>>, vector<32x32xf32>
    %cst = arith.constant dense<0.000000e+00> : vector<8x32xf32>
    %3 = tpu.matmul %1, %2, %cst {dimension_numbers = #tpu.dot_dimension_numbers<[1], [0], [0], [1], [0, 0, 1, 1], [], []>} : vector<8x32xf32>, vector<32x32xf32>, vector<8x32xf32> -> vector<8x32xf32>
    %cst_4 = arith.constant 0.353553385 : f32
    %4 = vector.broadcast %cst_4 : f32 to vector<8x32xf32>
    %5 = arith.mulf %3, %4 : vector<8x32xf32>
    %c0_5 = arith.constant 0 : index
    %c0_6 = arith.constant 0 : index
    %6 = vector.load %arg3[%c0_5, %c0_6] : memref<32x32xf32, #tpu.memory_space<vmem>>, vector<32x32xf32>
    %cst_7 = arith.constant dense<0.000000e+00> : vector<8x32xf32>
    %7 = tpu.matmul %1, %6, %cst_7 {dimension_numbers = #tpu.dot_dimension_numbers<[1], [0], [0], [1], [0, 0, 1, 1], [], []>} : vector<8x32xf32>, vector<32x32xf32>, vector<8x32xf32> -> vector<8x32xf32>
    %c0_8 = arith.constant 0 : index
    %c0_9 = arith.constant 0 : index
    %8 = vector.load %arg4[%c0_8, %c0_9] : memref<32x32xf32, #tpu.memory_space<vmem>>, vector<32x32xf32>
    %cst_10 = arith.constant dense<0.000000e+00> : vector<8x32xf32>
    %9 = tpu.matmul %1, %8, %cst_10 {dimension_numbers = #tpu.dot_dimension_numbers<[1], [0], [0], [1], [0, 0, 1, 1], [], []>} : vector<8x32xf32>, vector<32x32xf32>, vector<8x32xf32> -> vector<8x32xf32>
    %10 = tpu.iota {dimensions = array<i32: 0>} : vector<8x8xi32>
    %11 = tpu.iota {dimensions = array<i32: 1>} : vector<8x8xi32>
    %12 = arith.cmpi sle, %11, %10 : vector<8x8xi32>
    %13 = vector.extract_strided_slice %5 {offsets = [0, 0], sizes = [8, 8], strides = [1, 1]} : vector<8x32xf32> to vector<8x8xf32>
    %14 = vector.extract_strided_slice %7 {offsets = [0, 0], sizes = [8, 8], strides = [1, 1]} : vector<8x32xf32> to vector<8x8xf32>
    %15 = vector.extract_strided_slice %9 {offsets = [0, 0], sizes = [8, 8], strides = [1, 1]} : vector<8x32xf32> to vector<8x8xf32>
    %cst_11 = arith.constant dense<0.000000e+00> : vector<8x8xf32>
    %16 = tpu.matmul %13, %14, %cst_11 {dimension_numbers = #tpu.dot_dimension_numbers<[1], [1], [0], [0], [0, 0, 1, 0], [], []>} : vector<8x8xf32>, vector<8x8xf32>, vector<8x8xf32> -> vector<8x8xf32>
    %cst_12 = arith.constant -1.000000e+10 : f32
    %17 = vector.broadcast %cst_12 : f32 to vector<8x8xf32>
    %18 = arith.select %12, %16, %17 : vector<8x8xi1>, vector<8x8xf32>
    %cst_13 = arith.constant dense<0xFF800000> : vector<8xf32>
    %19 = vector.multi_reduction <maximumf>, %18, %cst_13 [1] : vector<8x8xf32> to vector<8xf32>
    %20 = vector.shape_cast %19 : vector<8xf32> to vector<8x1xf32>
    %21 = vector.broadcast %20 : vector<8x1xf32> to vector<8x8xf32>
    %22 = arith.subf %18, %21 : vector<8x8xf32>
    %23 = math.exp %22 : vector<8x8xf32>
    %cst_14 = arith.constant dense<0.000000e+00> : vector<8xf32>
    %24 = vector.multi_reduction <add>, %23, %cst_14 [1] : vector<8x8xf32> to vector<8xf32>
    %25 = vector.shape_cast %24 : vector<8xf32> to vector<8x1xf32>
    %26 = tpu.reciprocal %25 {approx = true} : vector<8x1xf32> -> vector<8x1xf32>
    %27 = vector.broadcast %26 : vector<8x1xf32> to vector<8x8xf32>
    %28 = arith.mulf %23, %27 : vector<8x8xf32>
    %cst_15 = arith.constant dense<0.000000e+00> : vector<8x8xf32>
    %29 = tpu.matmul %28, %15, %cst_15 {dimension_numbers = #tpu.dot_dimension_numbers<[1], [0], [0], [1], [0, 0, 1, 1], [], []>} : vector<8x8xf32>, vector<8x8xf32>, vector<8x8xf32> -> vector<8x8xf32>
    %c0_16 = arith.constant 0 : index
    %c0_17 = arith.constant 0 : index
    %30 = vector.load %arg7[%c0_16, %c0_17] : memref<8x32xf32, #tpu.memory_space<vmem>>, vector<8x8xf32>
    tpu.vector_store %arg7[%c0_16, %c0_17], %29 {strides = array<i32>} : memref<8x32xf32, #tpu.memory_space<vmem>>, vector<8x8xf32>,
    %31 = vector.extract_strided_slice %5 {offsets = [0, 8], sizes = [8, 8], strides = [1, 1]} : vector<8x32xf32> to vector<8x8xf32>
    %32 = vector.extract_strided_slice %7 {offsets = [0, 8], sizes = [8, 8], strides = [1, 1]} : vector<8x32xf32> to vector<8x8xf32>
    %33 = vector.extract_strided_slice %9 {offsets = [0, 8], sizes = [8, 8], strides = [1, 1]} : vector<8x32xf32> to vector<8x8xf32>
    %cst_18 = arith.constant dense<0.000000e+00> : vector<8x8xf32>
    %34 = tpu.matmul %31, %32, %cst_18 {dimension_numbers = #tpu.dot_dimension_numbers<[1], [1], [0], [0], [0, 0, 1, 0], [], []>} : vector<8x8xf32>, vector<8x8xf32>, vector<8x8xf32> -> vector<8x8xf32>
    %cst_19 = arith.constant -1.000000e+10 : f32
    %35 = vector.broadcast %cst_19 : f32 to vector<8x8xf32>
    %36 = arith.select %12, %34, %35 : vector<8x8xi1>, vector<8x8xf32>
    %cst_20 = arith.constant dense<0xFF800000> : vector<8xf32>
    %37 = vector.multi_reduction <maximumf>, %36, %cst_20 [1] : vector<8x8xf32> to vector<8xf32>
    %38 = vector.shape_cast %37 : vector<8xf32> to vector<8x1xf32>
    %39 = vector.broadcast %38 : vector<8x1xf32> to vector<8x8xf32>
    %40 = arith.subf %36, %39 : vector<8x8xf32>
    %41 = math.exp %40 : vector<8x8xf32>
    %cst_21 = arith.constant dense<0.000000e+00> : vector<8xf32>
    %42 = vector.multi_reduction <add>, %41, %cst_21 [1] : vector<8x8xf32> to vector<8xf32>
    %43 = vector.shape_cast %42 : vector<8xf32> to vector<8x1xf32>
    %44 = tpu.reciprocal %43 {approx = true} : vector<8x1xf32> -> vector<8x1xf32>
    %45 = vector.broadcast %44 : vector<8x1xf32> to vector<8x8xf32>
    %46 = arith.mulf %41, %45 : vector<8x8xf32>
    %cst_22 = arith.constant dense<0.000000e+00> : vector<8x8xf32>
    %47 = tpu.matmul %46, %33, %cst_22 {dimension_numbers = #tpu.dot_dimension_numbers<[1], [0], [0], [1], [0, 0, 1, 1], [], []>} : vector<8x8xf32>, vector<8x8xf32>, vector<8x8xf32> -> vector<8x8xf32>
    %c0_23 = arith.constant 0 : index
    %c8 = arith.constant 8 : index
    %48 = vector.load %arg7[%c0_23, %c8] : memref<8x32xf32, #tpu.memory_space<vmem>>, vector<8x8xf32>
    tpu.vector_store %arg7[%c0_23, %c8], %47 {strides = array<i32>} : memref<8x32xf32, #tpu.memory_space<vmem>>, vector<8x8xf32>,
    %49 = vector.extract_strided_slice %5 {offsets = [0, 16], sizes = [8, 8], strides = [1, 1]} : vector<8x32xf32> to vector<8x8xf32>
    %50 = vector.extract_strided_slice %7 {offsets = [0, 16], sizes = [8, 8], strides = [1, 1]} : vector<8x32xf32> to vector<8x8xf32>
    %51 = vector.extract_strided_slice %9 {offsets = [0, 16], sizes = [8, 8], strides = [1, 1]} : vector<8x32xf32> to vector<8x8xf32>
    %cst_24 = arith.constant dense<0.000000e+00> : vector<8x8xf32>
    %52 = tpu.matmul %49, %50, %cst_24 {dimension_numbers = #tpu.dot_dimension_numbers<[1], [1], [0], [0], [0, 0, 1, 0], [], []>} : vector<8x8xf32>, vector<8x8xf32>, vector<8x8xf32> -> vector<8x8xf32>
    %cst_25 = arith.constant -1.000000e+10 : f32
    %53 = vector.broadcast %cst_25 : f32 to vector<8x8xf32>
    %54 = arith.select %12, %52, %53 : vector<8x8xi1>, vector<8x8xf32>
    %cst_26 = arith.constant dense<0xFF800000> : vector<8xf32>
    %55 = vector.multi_reduction <maximumf>, %54, %cst_26 [1] : vector<8x8xf32> to vector<8xf32>
    %56 = vector.shape_cast %55 : vector<8xf32> to vector<8x1xf32>
    %57 = vector.broadcast %56 : vector<8x1xf32> to vector<8x8xf32>
    %58 = arith.subf %54, %57 : vector<8x8xf32>
    %59 = math.exp %58 : vector<8x8xf32>
    %cst_27 = arith.constant dense<0.000000e+00> : vector<8xf32>
    %60 = vector.multi_reduction <add>, %59, %cst_27 [1] : vector<8x8xf32> to vector<8xf32>
    %61 = vector.shape_cast %60 : vector<8xf32> to vector<8x1xf32>
    %62 = tpu.reciprocal %61 {approx = true} : vector<8x1xf32> -> vector<8x1xf32>
    %63 = vector.broadcast %62 : vector<8x1xf32> to vector<8x8xf32>
    %64 = arith.mulf %59, %63 : vector<8x8xf32>
    %cst_28 = arith.constant dense<0.000000e+00> : vector<8x8xf32>
    %65 = tpu.matmul %64, %51, %cst_28 {dimension_numbers = #tpu.dot_dimension_numbers<[1], [0], [0], [1], [0, 0, 1, 1], [], []>} : vector<8x8xf32>, vector<8x8xf32>, vector<8x8xf32> -> vector<8x8xf32>
    %c0_29 = arith.constant 0 : index
    %c16 = arith.constant 16 : index
    %66 = vector.load %arg7[%c0_29, %c16] : memref<8x32xf32, #tpu.memory_space<vmem>>, vector<8x8xf32>
    tpu.vector_store %arg7[%c0_29, %c16], %65 {strides = array<i32>} : memref<8x32xf32, #tpu.memory_space<vmem>>, vector<8x8xf32>,
    %67 = vector.extract_strided_slice %5 {offsets = [0, 24], sizes = [8, 8], strides = [1, 1]} : vector<8x32xf32> to vector<8x8xf32>
    %68 = vector.extract_strided_slice %7 {offsets = [0, 24], sizes = [8, 8], strides = [1, 1]} : vector<8x32xf32> to vector<8x8xf32>
    %69 = vector.extract_strided_slice %9 {offsets = [0, 24], sizes = [8, 8], strides = [1, 1]} : vector<8x32xf32> to vector<8x8xf32>
    %cst_30 = arith.constant dense<0.000000e+00> : vector<8x8xf32>
    %70 = tpu.matmul %67, %68, %cst_30 {dimension_numbers = #tpu.dot_dimension_numbers<[1], [1], [0], [0], [0, 0, 1, 0], [], []>} : vector<8x8xf32>, vector<8x8xf32>, vector<8x8xf32> -> vector<8x8xf32>
    %cst_31 = arith.constant -1.000000e+10 : f32
    %71 = vector.broadcast %cst_31 : f32 to vector<8x8xf32>
    %72 = arith.select %12, %70, %71 : vector<8x8xi1>, vector<8x8xf32>
    %cst_32 = arith.constant dense<0xFF800000> : vector<8xf32>
    %73 = vector.multi_reduction <maximumf>, %72, %cst_32 [1] : vector<8x8xf32> to vector<8xf32>
    %74 = vector.shape_cast %73 : vector<8xf32> to vector<8x1xf32>
    %75 = vector.broadcast %74 : vector<8x1xf32> to vector<8x8xf32>
    %76 = arith.subf %72, %75 : vector<8x8xf32>
    %77 = math.exp %76 : vector<8x8xf32>
    %cst_33 = arith.constant dense<0.000000e+00> : vector<8xf32>
    %78 = vector.multi_reduction <add>, %77, %cst_33 [1] : vector<8x8xf32> to vector<8xf32>
    %79 = vector.shape_cast %78 : vector<8xf32> to vector<8x1xf32>
    %80 = tpu.reciprocal %79 {approx = true} : vector<8x1xf32> -> vector<8x1xf32>
    %81 = vector.broadcast %80 : vector<8x1xf32> to vector<8x8xf32>
    %82 = arith.mulf %77, %81 : vector<8x8xf32>
    %cst_34 = arith.constant dense<0.000000e+00> : vector<8x8xf32>
    %83 = tpu.matmul %82, %69, %cst_34 {dimension_numbers = #tpu.dot_dimension_numbers<[1], [0], [0], [1], [0, 0, 1, 1], [], []>} : vector<8x8xf32>, vector<8x8xf32>, vector<8x8xf32> -> vector<8x8xf32>
    %c0_35 = arith.constant 0 : index
    %c24 = arith.constant 24 : index
    %84 = vector.load %arg7[%c0_35, %c24] : memref<8x32xf32, #tpu.memory_space<vmem>>, vector<8x8xf32>
    tpu.vector_store %arg7[%c0_35, %c24], %83 {strides = array<i32>} : memref<8x32xf32, #tpu.memory_space<vmem>>, vector<8x8xf32>,
    %c0_36 = arith.constant 0 : index
    %c0_37 = arith.constant 0 : index
    %85 = vector.load %arg7[%c0_36, %c0_37] : memref<8x32xf32, #tpu.memory_space<vmem>>, vector<8x32xf32>
    %c0_38 = arith.constant 0 : index
    %c0_39 = arith.constant 0 : index
    %86 = vector.load %arg5[%c0_38, %c0_39] : memref<32x32xf32, #tpu.memory_space<vmem>>, vector<32x32xf32>
    %cst_40 = arith.constant dense<0.000000e+00> : vector<8x32xf32>
    %87 = tpu.matmul %85, %86, %cst_40 {dimension_numbers = #tpu.dot_dimension_numbers<[1], [0], [0], [1], [0, 0, 1, 1], [], []>} : vector<8x32xf32>, vector<32x32xf32>, vector<8x32xf32> -> vector<8x32xf32>
    %c0_41 = arith.constant 0 : index
    %c0_42 = arith.constant 0 : index
    %c0_43 = arith.constant 0 : index
    %88 = vector.load %arg6[%c0_41, %c0_42, %c0_43] : memref<1x8x32xf32, #tpu.memory_space<vmem>>, vector<1x8x32xf32>
    %89 = vector.shape_cast %88 : vector<1x8x32xf32> to vector<8x32xf32>
    %90 = vector.shape_cast %87 : vector<8x32xf32> to vector<1x8x32xf32>
    tpu.vector_store %arg6[%c0_41, %c0_42, %c0_43], %90 {strides = array<i32>} : memref<1x8x32xf32, #tpu.memory_space<vmem>>, vector<1x8x32xf32>,
    return
  }
  func.func @transform_0(%arg0: i32) -> (i32, i32, i32) {
    %c0_i32 = arith.constant 0 : i32
    %c0_i32_0 = arith.constant 0 : i32
    %c0_i32_1 = arith.constant 0 : i32
    return %arg0, %c0_i32, %c0_i32_0 : i32, i32, i32
  }
  func.func @transform_1(%arg0: i32) -> (i32, i32) {
    %c0_i32 = arith.constant 0 : i32
    %c0_i32_0 = arith.constant 0 : i32
    %c0_i32_1 = arith.constant 0 : i32
    return %c0_i32, %c0_i32_0 : i32, i32
  }
  func.func @transform_2(%arg0: i32) -> (i32, i32) {
    %c0_i32 = arith.constant 0 : i32
    %c0_i32_0 = arith.constant 0 : i32
    %c0_i32_1 = arith.constant 0 : i32
    return %c0_i32, %c0_i32_0 : i32, i32
  }
  func.func @transform_3(%arg0: i32) -> (i32, i32) {
    %c0_i32 = arith.constant 0 : i32
    %c0_i32_0 = arith.constant 0 : i32
    %c0_i32_1 = arith.constant 0 : i32
    return %c0_i32, %c0_i32_0 : i32, i32
  }
  func.func @transform_4(%arg0: i32) -> (i32, i32) {
    %c0_i32 = arith.constant 0 : i32
    %c0_i32_0 = arith.constant 0 : i32
    %c0_i32_1 = arith.constant 0 : i32
    return %c0_i32, %c0_i32_0 : i32, i32
  }
  func.func @transform_5(%arg0: i32) -> (i32, i32, i32) {
    %c0_i32 = arith.constant 0 : i32
    %c0_i32_0 = arith.constant 0 : i32
    %c0_i32_1 = arith.constant 0 : i32
    return %arg0, %c0_i32, %c0_i32_0 : i32, i32, i32
  }
}

</mosaic_0001>

<llo_original>
// kernel: tpu_custom_call.1
$region0: #{tpu_custom_call.1}
  #allocation0 [shape = 'u32[]', space=smem, size = 0x4, offset = 0x4, fixed_abs, tag = 'smem constant byte address 0x4 - core index']
  #allocation1 [shape = 'u32[144,128]{1,0:T(1,128)}', space=vmem, size = 0x12000, scoped, tag = 'internal scratch']
  #allocation2 [shape = 'f32[8,32]{1,0:T(8,128)}', space=vmem, size = 0x1000, scoped, tag = 'scratch operand']
  %s0 = inlined_call_operand.hbm [shape: f32[2,8,32], index: 0, kind: input, shape index: {}]
  %s1 = inlined_call_operand.hbm [shape: f32[32,32], index: 1, kind: input, shape index: {}]
  %s2 = inlined_call_operand.hbm [shape: f32[32,32], index: 2, kind: input, shape index: {}]
  %s3 = inlined_call_operand.hbm [shape: f32[32,32], index: 3, kind: input, shape index: {}]
  %s4 = inlined_call_operand.hbm [shape: f32[32,32], index: 4, kind: input, shape index: {}]
  %s5 = inlined_call_operand.hbm [shape: f32[2,8,32], index: 5, kind: output, shape index: {}]
  %s6 = sld [smem:[#allocation0]]
  $region73: #{tpu_custom_call.1} parent=0
    _
  %s8 = ssub.s32 1, %s6
  %s9 = scalar_select 0, %s8, %s6
  $region1: #{tpu_custom_call.1} parent=0
    #allocation3 [shape = 'u8[8192]{0}', space=vmem, size = 0x2000, scoped, tag = 'input window, operand 0']
    #allocation4 [shape = 's32[2]{0}', space=sflag, size = 0x8, scoped, tag = 'scoped memory for tpu_custom_call.1']
    #allocation5 [shape = 's32[2]{0}', space=sflag, size = 0x8, scoped, tag = 'scoped memory for tpu_custom_call.1']
    #allocation6 [shape = 'u8[16384]{0}', space=vmem, size = 0x4000, scoped, tag = 'input window, operand 1, single buffered']
    #allocation7 [shape = 's32[1]{0}', space=sflag, size = 0x4, scoped, tag = 'scoped memory for tpu_custom_call.1']
    #allocation8 [shape = 'u8[16384]{0}', space=vmem, size = 0x4000, scoped, tag = 'input window, operand 2, single buffered']
    #allocation9 [shape = 'u8[16384]{0}', space=vmem, size = 0x4000, scoped, tag = 'input window, operand 3, single buffered']
    #allocation10 [shape = 's32[1]{0}', space=sflag, size = 0x4, scoped, tag = 'scoped memory for tpu_custom_call.1']
    #allocation11 [shape = 'u8[16384]{0}', space=vmem, size = 0x4000, scoped, tag = 'input window, operand 4, single buffered']
    #allocation12 [shape = 'u8[8192]{0}', space=vmem, size = 0x2000, scoped, tag = 'output window, operand 0']
    %10 = vsyncpa [#allocation4], 0
    %s11 = scalar_lea.sflag [#allocation4], 1
    %12 = vsyncpa %s11, 0
    %13 = vsyncpa [#allocation7], 0
    %14 = vsyncpa [#allocation10], 0
    %15 = vsyncpa [#allocation5], 0
    %s16 = scalar_lea.sflag [#allocation5], 1
    %17 = vsyncpa %s16, 0
    loop: start=0, step=1, limit=4
    $region2: #{tpu_custom_call.1} parent=1 // loop_pre_header
      _
    $region3: #{tpu_custom_call.1} parent=1 // loop_header
      %s19 = sphi 0, %s23
      %p20 = scmp.ge.s32.totalorder %s19, 4
      %s29 = sphi 0, %s31
      %s32 = sphi 0, %s29
      %s33 = sphi 0, %s32
      %s49 = sphi 0, %s33
      %s53 = sphi 0, %s53
      %s55 = sphi 0, %s53
      %s56 = sphi 0, %s55
      %s70 = sphi 0, %s56
      %s74 = sphi 0, %s74
      %s76 = sphi 0, %s74
      %s77 = sphi 0, %s76
      %s91 = sphi 0, %s77
      %s95 = sphi 0, %s95
      %s97 = sphi 0, %s95
      %s98 = sphi 0, %s97
      %s112 = sphi 0, %s98
      %s116 = sphi 0, %s116
      %s118 = sphi 0, %s116
      %s119 = sphi 0, %s118
      %s133 = sphi 0, %s119
      %s139 = sphi 0, %s141
      %s142 = sphi 0, %s139
      %s143 = sphi 0, %s142
      %s159 = sphi 0, %s143
    $region4: #{tpu_custom_call.1} parent=1 // loop_header_branch
      %22 = sbr.rel (%p20) target = $region8
    $region5: #{tpu_custom_call.1} parent=1 // loop_body
      %s24 = ssub.s32 %s19, 1
      %s25 = ssub.s32 %s19, 2
      %s26 = sadd.s32 %s19, 1
      %s27 = ssub.s32 %s19, %s26
      %p28 = scmp.eq.s32.totalorder %s27, 0
      %s30 = sadd.s32 %s29, 1
      %s31 = scalar_select %p28, %s29, %s30
      %p34 = pneg %p28
      %p35 = scmp.eq.s32.totalorder %s19, 1
      %p36 = por %p34, %p35
      %p37 = scmp.ne.s32.totalorder %s29, %s32
      %p38 = scmp.eq.s32.totalorder %s19, 0
      %p39 = por %p37, %p38
      %p40 = scmp.ne.s32.totalorder %s29, %s32
      %p41 = scmp.eq.s32.totalorder %s24, 1
      %p42 = por %p40, %p41
      %p43 = scmp.ne.s32.totalorder %s32, %s33
      %p44 = scmp.eq.s32.totalorder %s24, 0
      %p45 = por %p43, %p44
      %p46 = scmp.ne.s32.totalorder %s32, %s33
      %p47 = scmp.eq.s32.totalorder %s25, 1
      %p48 = por %p46, %p47
      %p50 = scmp.ne.s32.totalorder %s33, %s49
      %p51 = scmp.eq.s32.totalorder %s25, 0
      %p52 = por %p50, %p51
      %s54 = sadd.s32 %s53, 1
      %p57 = scmp.eq.s32.totalorder %s19, 1
      %p58 = scmp.ne.s32.totalorder %s53, %s55
      %p59 = scmp.eq.s32.totalorder %s19, 0
      %p60 = por %p58, %p59
      %p61 = scmp.ne.s32.totalorder %s53, %s55
      %p62 = scmp.eq.s32.totalorder %s24, 1
      %p63 = por %p61, %p62
      %p64 = scmp.ne.s32.totalorder %s55, %s56
      %p65 = scmp.eq.s32.totalorder %s24, 0
      %p66 = por %p64, %p65
      %p67 = scmp.ne.s32.totalorder %s55, %s56
      %p68 = scmp.eq.s32.totalorder %s25, 1
      %p69 = por %p67, %p68
      %p71 = scmp.ne.s32.totalorder %s56, %s70
      %p72 = scmp.eq.s32.totalorder %s25, 0
      %p73 = por %p71, %p72
      %s75 = sadd.s32 %s74, 1
      %p78 = scmp.eq.s32.totalorder %s19, 1
      %p79 = scmp.ne.s32.totalorder %s74, %s76
      %p80 = scmp.eq.s32.totalorder %s19, 0
      %p81 = por %p79, %p80
      %p82 = scmp.ne.s32.totalorder %s74, %s76
      %p83 = scmp.eq.s32.totalorder %s24, 1
      %p84 = por %p82, %p83
      %p85 = scmp.ne.s32.totalorder %s76, %s77
      %p86 = scmp.eq.s32.totalorder %s24, 0
      %p87 = por %p85, %p86
      %p88 = scmp.ne.s32.totalorder %s76, %s77
      %p89 = scmp.eq.s32.totalorder %s25, 1
      %p90 = por %p88, %p89
      %p92 = scmp.ne.s32.totalorder %s77, %s91
      %p93 = scmp.eq.s32.totalorder %s25, 0
      %p94 = por %p92, %p93
      %s96 = sadd.s32 %s95, 1
      %p99 = scmp.eq.s32.totalorder %s19, 1
      %p100 = scmp.ne.s32.totalorder %s95, %s97
      %p101 = scmp.eq.s32.totalorder %s19, 0
      %p102 = por %p100, %p101
      %p103 = scmp.ne.s32.totalorder %s95, %s97
      %p104 = scmp.eq.s32.totalorder %s24, 1
      %p105 = por %p103, %p104
      %p106 = scmp.ne.s32.totalorder %s97, %s98
      %p107 = scmp.eq.s32.totalorder %s24, 0
      %p108 = por %p106, %p107
      %p109 = scmp.ne.s32.totalorder %s97, %s98
      %p110 = scmp.eq.s32.totalorder %s25, 1
      %p111 = por %p109, %p110
      %p113 = scmp.ne.s32.totalorder %s98, %s112
      %p114 = scmp.eq.s32.totalorder %s25, 0
      %p115 = por %p113, %p114
      %s117 = sadd.s32 %s116, 1
      %p120 = scmp.eq.s32.totalorder %s19, 1
      %p121 = scmp.ne.s32.totalorder %s116, %s118
      %p122 = scmp.eq.s32.totalorder %s19, 0
      %p123 = por %p121, %p122
      %p124 = scmp.ne.s32.totalorder %s116, %s118
      %p125 = scmp.eq.s32.totalorder %s24, 1
      %p126 = por %p124, %p125
      %p127 = scmp.ne.s32.totalorder %s118, %s119
      %p128 = scmp.eq.s32.totalorder %s24, 0
      %p129 = por %p127, %p128
      %p130 = scmp.ne.s32.totalorder %s118, %s119
      %p131 = scmp.eq.s32.totalorder %s25, 1
      %p132 = por %p130, %p131
      %p134 = scmp.ne.s32.totalorder %s119, %s133
      %p135 = scmp.eq.s32.totalorder %s25, 0
      %p136 = por %p134, %p135
      %s137 = ssub.s32 %s19, %s26
      %p138 = scmp.eq.s32.totalorder %s137, 0
      %s140 = sadd.s32 %s139, 1
      %s141 = scalar_select %p138, %s139, %s140
      %p144 = pneg %p138
      %p145 = scmp.eq.s32.totalorder %s19, 1
      %p146 = por %p144, %p145
      %p147 = scmp.ne.s32.totalorder %s139, %s142
      %p148 = scmp.eq.s32.totalorder %s19, 0
      %p149 = por %p147, %p148
      %p150 = scmp.ne.s32.totalorder %s139, %s142
      %p151 = scmp.eq.s32.totalorder %s24, 1
      %p152 = por %p150, %p151
      %p153 = scmp.ne.s32.totalorder %s142, %s143
      %p154 = scmp.eq.s32.totalorder %s24, 0
      %p155 = por %p153, %p154
      %p156 = scmp.ne.s32.totalorder %s142, %s143
      %p157 = scmp.eq.s32.totalorder %s25, 1
      %p158 = por %p156, %p157
      %p160 = scmp.ne.s32.totalorder %s143, %s159
      %p161 = scmp.eq.s32.totalorder %s25, 0
      %p162 = por %p160, %p161
      %p163 = scmp.le.s32.totalorder 1, %s19
      %p164 = scmp.lt.s32.totalorder %s19, 3
      %p165 = pnand %p163, %p164
      %p166 = pneg %p165
      // Predicated region
      $region9: #{tpu_custom_call.1} parent=5 // pred_check
        _
      $region10: #{tpu_custom_call.1} parent=5 // pred_check_branch
        %168 = sbr.rel (%p165) target = $region12
      $region11: #{tpu_custom_call.1} parent=5 // pred_region
        %s169 = ssub.s32 %s19, 1
        // Predicated region
        $region13: #{tpu_custom_call.1} parent=11 // pred_check
          %p170 = pneg %p66
        $region14: #{tpu_custom_call.1} parent=11 // pred_check_branch
          %172 = sbr.rel (%p170) target = $region16
        $region15: #{tpu_custom_call.1} parent=11 // pred_region
          %s174 = ssub.s32 512, 512
          %175 = vsyncadd [#allocation7], %s174
          %s176 = sshll.u32 [#allocation6], 4
          %s177 = int_to_ptr.vmem [resolvable:$true] %s176
          %182 = dma.hbm_to_vmem [thread:$0]  %s1, 512, %s177, [#allocation7], 128, 128, 8
        $region16: #{tpu_custom_call.1} parent=11 // pred_fallthru
          _
        // Predicated region
        $region17: #{tpu_custom_call.1} parent=11 // pred_check
          %p183 = pneg %p87
        $region18: #{tpu_custom_call.1} parent=11 // pred_check_branch
          %185 = sbr.rel (%p183) target = $region20
        $region19: #{tpu_custom_call.1} parent=11 // pred_region
          %s187 = ssub.s32 512, 512
          %188 = vsyncadd [#allocation7], %s187
          %s189 = sshll.u32 [#allocation8], 4
          %s190 = int_to_ptr.vmem [resolvable:$true] %s189
          %195 = dma.hbm_to_vmem [thread:$0]  %s2, 512, %s190, [#allocation7], 128, 128, 8
        $region20: #{tpu_custom_call.1} parent=11 // pred_fallthru
          _
        // Predicated region
        $region21: #{tpu_custom_call.1} parent=11 // pred_check
          %p196 = pneg %p108
        $region22: #{tpu_custom_call.1} parent=11 // pred_check_branch
          %198 = sbr.rel (%p196) target = $region24
        $region23: #{tpu_custom_call.1} parent=11 // pred_region
          %s200 = ssub.s32 512, 512
          %201 = vsyncadd [#allocation10], %s200
          %s202 = sshll.u32 [#allocation9], 4
          %s203 = int_to_ptr.vmem [resolvable:$true] %s202
          %208 = dma.hbm_to_vmem [thread:$0]  %s3, 512, %s203, [#allocation10], 128, 128, 8
        $region24: #{tpu_custom_call.1} parent=11 // pred_fallthru
          _
        // Predicated region
        $region25: #{tpu_custom_call.1} parent=11 // pred_check
          %p209 = pneg %p129
        $region26: #{tpu_custom_call.1} parent=11 // pred_check_branch
          %211 = sbr.rel (%p209) target = $region28
        $region27: #{tpu_custom_call.1} parent=11 // pred_region
          %s213 = ssub.s32 512, 512
          %214 = vsyncadd [#allocation10], %s213
          %s215 = sshll.u32 [#allocation11], 4
          %s216 = int_to_ptr.vmem [resolvable:$true] %s215
          %221 = dma.hbm_to_vmem [thread:$0]  %s4, 512, %s216, [#allocation10], 128, 128, 8
        $region28: #{tpu_custom_call.1} parent=11 // pred_fallthru
          _
      $region12: #{tpu_custom_call.1} parent=5 // pred_fallthru
        _
      %p222 = scmp.lt.s32.totalorder %s19, 2
      // Predicated region
      $region29: #{tpu_custom_call.1} parent=5 // pred_check
        %p223 = pneg %p222
      $region30: #{tpu_custom_call.1} parent=5 // pred_check_branch
        %225 = sbr.rel (%p223) target = $region32
      $region31: #{tpu_custom_call.1} parent=5 // pred_region
        // Predicated region
        $region33: #{tpu_custom_call.1} parent=31 // pred_check
          %p226 = pneg %p39
        $region34: #{tpu_custom_call.1} parent=31 // pred_check_branch
          %228 = sbr.rel (%p226) target = $region36
        $region35: #{tpu_custom_call.1} parent=31 // pred_region
          %s229 = sand.u32 %s29, 1
          %s230 = scalar_lea.sflag [#allocation4], %s229
          %s231 = sand.u32 %s29, 1
          %s232 = smul.addr %s231, 8
          %s233 = scalar_lea.vmem [#allocation3], %s232
          %s235 = ssub.s32 128, 128
          %236 = vsyncadd %s230, %s235
          %s237 = smul.addr %s19, 128
          %s238 = scalar_lea.hbm %s0, %s237
          %s240 = sshll.u32 %s233, 4
          %s241 = int_to_ptr.vmem [resolvable:$true] %s240
          %243 = dma.hbm_to_vmem [thread:$0]  %s238, 128, %s241, %s230
        $region36: #{tpu_custom_call.1} parent=31 // pred_fallthru
          _
      $region32: #{tpu_custom_call.1} parent=5 // pred_fallthru
        _
      %p244 = scmp.le.s32.totalorder 1, %s19
      %p245 = scmp.lt.s32.totalorder %s19, 3
      %p246 = pnand %p244, %p245
      %p247 = pneg %p246
      // Predicated region
      $region37: #{tpu_custom_call.1} parent=5 // pred_check
        _
      $region38: #{tpu_custom_call.1} parent=5 // pred_check_branch
        %249 = sbr.rel (%p246) target = $region40
      $region39: #{tpu_custom_call.1} parent=5 // pred_region
        %s250 = ssub.s32 %s19, 1
        %s251 = sand.u32 %s32, 1
        %s252 = scalar_lea.sflag [#allocation4], %s251
        %s253 = sand.u32 %s32, 1
        %s254 = smul.addr %s253, 8
        %s255 = scalar_lea.vmem [#allocation3], %s254
        // Predicated region
        $region41: #{tpu_custom_call.1} parent=39 // pred_check
          %p256 = pneg %p45
        $region42: #{tpu_custom_call.1} parent=39 // pred_check_branch
          %258 = sbr.rel (%p256) target = $region44
        $region43: #{tpu_custom_call.1} parent=39 // pred_region
          %259 = dma.done %s252, 128
        $region44: #{tpu_custom_call.1} parent=39 // pred_fallthru
          _
        // Predicated region
        $region45: #{tpu_custom_call.1} parent=39 // pred_check
          %p260 = pneg %p66
        $region46: #{tpu_custom_call.1} parent=39 // pred_check_branch
          %262 = sbr.rel (%p260) target = $region48
        $region47: #{tpu_custom_call.1} parent=39 // pred_region
          %263 = dma.done [#allocation7], 512
        $region48: #{tpu_custom_call.1} parent=39 // pred_fallthru
          _
        // Predicated region
        $region49: #{tpu_custom_call.1} parent=39 // pred_check
          %p264 = pneg %p87
        $region50: #{tpu_custom_call.1} parent=39 // pred_check_branch
          %266 = sbr.rel (%p264) target = $region52
        $region51: #{tpu_custom_call.1} parent=39 // pred_region
          %267 = dma.done [#allocation7], 512
        $region52: #{tpu_custom_call.1} parent=39 // pred_fallthru
          _
        // Predicated region
        $region53: #{tpu_custom_call.1} parent=39 // pred_check
          %p268 = pneg %p108
        $region54: #{tpu_custom_call.1} parent=39 // pred_check_branch
          %270 = sbr.rel (%p268) target = $region56
        $region55: #{tpu_custom_call.1} parent=39 // pred_region
          %271 = dma.done [#allocation10], 512
        $region56: #{tpu_custom_call.1} parent=39 // pred_fallthru
          _
        // Predicated region
        $region57: #{tpu_custom_call.1} parent=39 // pred_check
          %p272 = pneg %p129
        $region58: #{tpu_custom_call.1} parent=39 // pred_check_branch
          %274 = sbr.rel (%p272) target = $region60
        $region59: #{tpu_custom_call.1} parent=39 // pred_region
          %275 = dma.done [#allocation10], 512
        $region60: #{tpu_custom_call.1} parent=39 // pred_fallthru
          _
        %s276 = sand.u32 %s32, 1
        %s277 = scalar_lea.sflag [#allocation4], %s276
        %s278 = sand.u32 %s32, 1
        %s279 = smul.addr %s278, 8
        %s280 = scalar_lea.vmem [#allocation3], %s279
        %p281 = pneg %p45
        %p282 = pneg %p42
        %p283 = pneg %p66
        %p284 = pneg %p63
        %p285 = pneg %p87
        %p286 = pneg %p84
        %p287 = pneg %p108
        %p288 = pneg %p105
        %p289 = pneg %p129
        %p290 = pneg %p126
        %p291 = pneg %p155
        %p292 = pneg %p152
        %s293 = sand.u32 %s142, 1
        %s294 = scalar_lea.sflag [#allocation5], %s293
        %s295 = sand.u32 %s142, 1
        %s296 = smul.addr %s295, 8
        %s297 = scalar_lea.vmem [#allocation12], %s296
        %v298 = vld [vmem:[%s255] sm:$0xff]
        %v299 = vld [vmem:[#allocation6] sm:$0xff]
        %v300 = vld [vmem:[#allocation6 + $0x8] sm:$0xff]
        %v301 = vld [vmem:[#allocation6 + $0x10] sm:$0xff]
        %v302 = vld [vmem:[#allocation6 + $0x18] sm:$0xff]
        %vm303 = vcmask 261120
        %v305 = vsel %vm303, %v298, 0
        %307 = vmatprep.subr.mxu0 0.0
        %308 = vmatpush1.msra.mxu0 %v299
        %309 = vmatprep.subr.mxu0 0.0
        %310 = vmatpush1.msra.mxu0 %v300
        %311 = vmatprep.subr.mxu0 0.0
        %312 = vmatpush1.msra.mxu0 %v301
        %313 = vmatprep.subr.mxu0 0.0
        %314 = vmatpush1.msra.mxu0 %v302
        %315 = vmatprep.subr.mxu0 0.0
        %316 = vmatpush1.msra.mxu0 0.0
        %317 = vmatprep.subr.mxu0 0.0
        %318 = vmatpush1.msra.mxu0 0.0
        %319 = vmatprep.subr.mxu0 0.0
        %320 = vmatpush1.msra.mxu0 0.0
        %321 = vmatprep.subr.mxu0 0.0
        %322 = vmatpush1.msra.mxu0 0.0
        %323 = vmatprep.subr.mxu0 0.0
        %324 = vmatpush1.msra.mxu0 0.0
        %325 = vmatprep.subr.mxu0 0.0
        %326 = vmatpush1.msra.mxu0 0.0
        %327 = vmatprep.subr.mxu0 0.0
        %328 = vmatpush1.msra.mxu0 0.0
        %329 = vmatprep.subr.mxu0 0.0
        %330 = vmatpush1.msra.mxu0 0.0
        %331 = vmatprep.subr.mxu0 0.0
        %332 = vmatpush1.msra.mxu0 0.0
        %333 = vmatprep.subr.mxu0 0.0
        %334 = vmatpush1.msra.mxu0 0.0
        %335 = vmatprep.subr.mxu0 0.0
        %336 = vmatpush1.msra.mxu0 0.0
        %337 = vmatprep.subr.mxu0 0.0
        %338 = vmatpush1.msra.mxu0 0.0
        %339 = vmatprep.subr.mxu0 0.0
        %340 = vmatpush1.msra.mxu0 0.0
        %341 = vmatprep.subr.mxu0 0.0
        %342 = vmatpush1.msra.mxu0 0.0
        %343 = vmatprep.subr.mxu0 0.0
        %344 = vmatpush1.msra.mxu0 0.0
        %345 = vmatprep.subr.mxu0 0.0
        %346 = vmatpush1.msra.mxu0 0.0
        %347 = vmatprep.subr.mxu0 0.0
        %348 = vmatpush1.msra.mxu0 0.0
        %349 = vmatprep.subr.mxu0 0.0
        %350 = vmatpush1.msra.mxu0 0.0
        %351 = vmatprep.subr.mxu0 0.0
        %352 = vmatpush1.msra.mxu0 0.0
        %353 = vmatprep.subr.mxu0 0.0
        %354 = vmatpush1.msra.mxu0 0.0
        %355 = vmatprep.subr.mxu0 0.0
        %356 = vmatpush1.msra.mxu0 0.0
        %357 = vmatprep.subr.mxu0 0.0
        %358 = vmatpush1.msra.mxu0 0.0
        %359 = vmatprep.subr.mxu0 0.0
        %360 = vmatpush1.msra.mxu0 0.0
        %361 = vmatprep.subr.mxu0 0.0
        %362 = vmatpush1.msra.mxu0 0.0
        %363 = vmatprep.subr.mxu0 0.0
        %364 = vmatpush1.msra.mxu0 0.0
        %365 = vmatprep.subr.mxu0 0.0
        %366 = vmatpush1.msra.mxu0 0.0
        %367 = vmatprep.subr.mxu0 0.0
        %368 = vmatpush1.msra.mxu0 0.0
        %369 = vmatprep.subr.mxu0 0.0
        %370 = vmatpush1.msra.mxu0 0.0
        %371 = vmatprep.mubr.f32.mxu0 0.0
        %372 = vmatmul.mubr.f32.gmra.mrb[0].mxu0 %v305
        %v373 = vpop.f32.mrb[0].mxu0
        %v374 = vadd.f32 0.0, %v373
        %v375 = vpop.f32.mrb[0].mxu0
        %376 = vdwg.mxu0
        %v377 = vmul.f32 %v374, 0.35355338
        %v378 = vld [vmem:[#allocation8] sm:$0xff]
        %v379 = vld [vmem:[#allocation8 + $0x8] sm:$0xff]
        %v380 = vld [vmem:[#allocation8 + $0x10] sm:$0xff]
        %v381 = vld [vmem:[#allocation8 + $0x18] sm:$0xff]
        %382 = vmatprep.subr.mxu0 0.0
        %383 = vmatpush1.msra.mxu0 %v378
        %384 = vmatprep.subr.mxu0 0.0
        %385 = vmatpush1.msra.mxu0 %v379
        %386 = vmatprep.subr.mxu0 0.0
        %387 = vmatpush1.msra.mxu0 %v380
        %388 = vmatprep.subr.mxu0 0.0
        %389 = vmatpush1.msra.mxu0 %v381
        %390 = vmatprep.subr.mxu0 0.0
        %391 = vmatpush1.msra.mxu0 0.0
        %392 = vmatprep.subr.mxu0 0.0
        %393 = vmatpush1.msra.mxu0 0.0
        %394 = vmatprep.subr.mxu0 0.0
        %395 = vmatpush1.msra.mxu0 0.0
        %396 = vmatprep.subr.mxu0 0.0
        %397 = vmatpush1.msra.mxu0 0.0
        %398 = vmatprep.subr.mxu0 0.0
        %399 = vmatpush1.msra.mxu0 0.0
        %400 = vmatprep.subr.mxu0 0.0
        %401 = vmatpush1.msra.mxu0 0.0
        %402 = vmatprep.subr.mxu0 0.0
        %403 = vmatpush1.msra.mxu0 0.0
        %404 = vmatprep.subr.mxu0 0.0
        %405 = vmatpush1.msra.mxu0 0.0
        %406 = vmatprep.subr.mxu0 0.0
        %407 = vmatpush1.msra.mxu0 0.0
        %408 = vmatprep.subr.mxu0 0.0
        %409 = vmatpush1.msra.mxu0 0.0
        %410 = vmatprep.subr.mxu0 0.0
        %411 = vmatpush1.msra.mxu0 0.0
        %412 = vmatprep.subr.mxu0 0.0
        %413 = vmatpush1.msra.mxu0 0.0
        %414 = vmatprep.subr.mxu0 0.0
        %415 = vmatpush1.msra.mxu0 0.0
        %416 = vmatprep.subr.mxu0 0.0
        %417 = vmatpush1.msra.mxu0 0.0
        %418 = vmatprep.subr.mxu0 0.0
        %419 = vmatpush1.msra.mxu0 0.0
        %420 = vmatprep.subr.mxu0 0.0
        %421 = vmatpush1.msra.mxu0 0.0
        %422 = vmatprep.subr.mxu0 0.0
        %423 = vmatpush1.msra.mxu0 0.0
        %424 = vmatprep.subr.mxu0 0.0
        %425 = vmatpush1.msra.mxu0 0.0
        %426 = vmatprep.subr.mxu0 0.0
        %427 = vmatpush1.msra.mxu0 0.0
        %428 = vmatprep.subr.mxu0 0.0
        %429 = vmatpush1.msra.mxu0 0.0
        %430 = vmatprep.subr.mxu0 0.0
        %431 = vmatpush1.msra.mxu0 0.0
        %432 = vmatprep.subr.mxu0 0.0
        %433 = vmatpush1.msra.mxu0 0.0
        %434 = vmatprep.subr.mxu0 0.0
        %435 = vmatpush1.msra.mxu0 0.0
        %436 = vmatprep.subr.mxu0 0.0
        %437 = vmatpush1.msra.mxu0 0.0
        %438 = vmatprep.subr.mxu0 0.0
        %439 = vmatpush1.msra.mxu0 0.0
        %440 = vmatprep.subr.mxu0 0.0
        %441 = vmatpush1.msra.mxu0 0.0
        %442 = vmatprep.subr.mxu0 0.0
        %443 = vmatpush1.msra.mxu0 0.0
        %444 = vmatprep.subr.mxu0 0.0
        %445 = vmatpush1.msra.mxu0 0.0
        %446 = vmatprep.mubr.f32.mxu0 0.0
        %447 = vmatmul.mubr.f32.gmra.mrb[0].mxu0 %v305
        %v448 = vpop.f32.mrb[0].mxu0
        %v449 = vadd.f32 0.0, %v448
        %v450 = vpop.f32.mrb[0].mxu0
        %451 = vdwg.mxu0
        %v452 = vld [vmem:[#allocation9] sm:$0xff]
        %v453 = vld [vmem:[#allocation9 + $0x8] sm:$0xff]
        %v454 = vld [vmem:[#allocation9 + $0x10] sm:$0xff]
        %v455 = vld [vmem:[#allocation9 + $0x18] sm:$0xff]
        %456 = vmatprep.subr.mxu0 0.0
        %457 = vmatpush1.msra.mxu0 %v452
        %458 = vmatprep.subr.mxu0 0.0
        %459 = vmatpush1.msra.mxu0 %v453
        %460 = vmatprep.subr.mxu0 0.0
        %461 = vmatpush1.msra.mxu0 %v454
        %462 = vmatprep.subr.mxu0 0.0
        %463 = vmatpush1.msra.mxu0 %v455
        %464 = vmatprep.subr.mxu0 0.0
        %465 = vmatpush1.msra.mxu0 0.0
        %466 = vmatprep.subr.mxu0 0.0
        %467 = vmatpush1.msra.mxu0 0.0
        %468 = vmatprep.subr.mxu0 0.0
        %469 = vmatpush1.msra.mxu0 0.0
        %470 = vmatprep.subr.mxu0 0.0
        %471 = vmatpush1.msra.mxu0 0.0
        %472 = vmatprep.subr.mxu0 0.0
        %473 = vmatpush1.msra.mxu0 0.0
        %474 = vmatprep.subr.mxu0 0.0
        %475 = vmatpush1.msra.mxu0 0.0
        %476 = vmatprep.subr.mxu0 0.0
        %477 = vmatpush1.msra.mxu0 0.0
        %478 = vmatprep.subr.mxu0 0.0
        %479 = vmatpush1.msra.mxu0 0.0
        %480 = vmatprep.subr.mxu0 0.0
        %481 = vmatpush1.msra.mxu0 0.0
        %482 = vmatprep.subr.mxu0 0.0
        %483 = vmatpush1.msra.mxu0 0.0
        %484 = vmatprep.subr.mxu0 0.0
        %485 = vmatpush1.msra.mxu0 0.0
        %486 = vmatprep.subr.mxu0 0.0
        %487 = vmatpush1.msra.mxu0 0.0
        %488 = vmatprep.subr.mxu0 0.0
        %489 = vmatpush1.msra.mxu0 0.0
        %490 = vmatprep.subr.mxu0 0.0
        %491 = vmatpush1.msra.mxu0 0.0
        %492 = vmatprep.subr.mxu0 0.0
        %493 = vmatpush1.msra.mxu0 0.0
        %494 = vmatprep.subr.mxu0 0.0
        %495 = vmatpush1.msra.mxu0 0.0
        %496 = vmatprep.subr.mxu0 0.0
        %497 = vmatpush1.msra.mxu0 0.0
        %498 = vmatprep.subr.mxu0 0.0
        %499 = vmatpush1.msra.mxu0 0.0
        %500 = vmatprep.subr.mxu0 0.0
        %501 = vmatpush1.msra.mxu0 0.0
        %502 = vmatprep.subr.mxu0 0.0
        %503 = vmatpush1.msra.mxu0 0.0
        %504 = vmatprep.subr.mxu0 0.0
        %505 = vmatpush1.msra.mxu0 0.0
        %506 = vmatprep.subr.mxu0 0.0
        %507 = vmatpush1.msra.mxu0 0.0
        %508 = vmatprep.subr.mxu0 0.0
        %509 = vmatpush1.msra.mxu0 0.0
        %510 = vmatprep.subr.mxu0 0.0
        %511 = vmatpush1.msra.mxu0 0.0
        %512 = vmatprep.subr.mxu0 0.0
        %513 = vmatpush1.msra.mxu0 0.0
        %514 = vmatprep.subr.mxu0 0.0
        %515 = vmatpush1.msra.mxu0 0.0
        %516 = vmatprep.subr.mxu0 0.0
        %517 = vmatpush1.msra.mxu0 0.0
        %518 = vmatprep.subr.mxu0 0.0
        %519 = vmatpush1.msra.mxu0 0.0
        %520 = vmatprep.mubr.f32.mxu0 0.0
        %521 = vmatmul.mubr.f32.gmra.mrb[0].mxu0 %v305
        %v522 = vpop.f32.mrb[0].mxu0
        %v523 = vadd.f32 0.0, %v522
        %v524 = vpop.f32.mrb[0].mxu0
        %525 = vdwg.mxu0
        %v526 = vlaneseq
        %v527 = vshrl.u32 %v526, 7
        %v528 = vlaneseq
        %v529 = vand.u32 %v528, 127
        %vm530 = vcmp.le.s32.totalorder %v529, %v527
        %vm531 = vcmask 64512
        %v533 = vsel %vm531, %v377, 0
        %v536 = vsel %vm531, %v449, 0
        %538 = vmatprep.subr.mxu0 0.0
        %539 = vmatpush1.xpose.msra.mxu0 %v536
        %540 = vmatprep.subr.mxu0 0.0
        %541 = vmatpush1.xpose.msra.mxu0 0.0
        %542 = vmatprep.subr.mxu0 0.0
        %543 = vmatpush1.xpose.msra.mxu0 0.0
        %544 = vmatprep.subr.mxu0 0.0
        %545 = vmatpush1.xpose.msra.mxu0 0.0
        %546 = vmatprep.subr.mxu0 0.0
        %547 = vmatpush1.xpose.msra.mxu0 0.0
        %548 = vmatprep.subr.mxu0 0.0
        %549 = vmatpush1.xpose.msra.mxu0 0.0
        %550 = vmatprep.subr.mxu0 0.0
        %551 = vmatpush1.xpose.msra.mxu0 0.0
        %552 = vmatprep.subr.mxu0 0.0
        %553 = vmatpush1.xpose.msra.mxu0 0.0
        %554 = vmatprep.subr.mxu0 0.0
        %555 = vmatpush1.xpose.msra.mxu0 0.0
        %556 = vmatprep.subr.mxu0 0.0
        %557 = vmatpush1.xpose.msra.mxu0 0.0
        %558 = vmatprep.subr.mxu0 0.0
        %559 = vmatpush1.xpose.msra.mxu0 0.0
        %560 = vmatprep.subr.mxu0 0.0
        %561 = vmatpush1.xpose.msra.mxu0 0.0
        %562 = vmatprep.subr.mxu0 0.0
        %563 = vmatpush1.xpose.msra.mxu0 0.0
        %564 = vmatprep.subr.mxu0 0.0
        %565 = vmatpush1.xpose.msra.mxu0 0.0
        %566 = vmatprep.subr.mxu0 0.0
        %567 = vmatpush1.xpose.msra.mxu0 0.0
        %568 = vmatprep.subr.mxu0 0.0
        %569 = vmatpush1.xpose.msra.mxu0 0.0
        %570 = vmatprep.subr.mxu0 0.0
        %571 = vmatpush1.xpose.msra.mxu0 0.0
        %572 = vmatprep.subr.mxu0 0.0
        %573 = vmatpush1.xpose.msra.mxu0 0.0
        %574 = vmatprep.subr.mxu0 0.0
        %575 = vmatpush1.xpose.msra.mxu0 0.0
        %576 = vmatprep.subr.mxu0 0.0
        %577 = vmatpush1.xpose.msra.mxu0 0.0
        %578 = vmatprep.subr.mxu0 0.0
        %579 = vmatpush1.xpose.msra.mxu0 0.0
        %580 = vmatprep.subr.mxu0 0.0
        %581 = vmatpush1.xpose.msra.mxu0 0.0
        %582 = vmatprep.subr.mxu0 0.0
        %583 = vmatpush1.xpose.msra.mxu0 0.0
        %584 = vmatprep.subr.mxu0 0.0
        %585 = vmatpush1.xpose.msra.mxu0 0.0
        %586 = vmatprep.subr.mxu0 0.0
        %587 = vmatpush1.xpose.msra.mxu0 0.0
        %588 = vmatprep.subr.mxu0 0.0
        %589 = vmatpush1.xpose.msra.mxu0 0.0
        %590 = vmatprep.subr.mxu0 0.0
        %591 = vmatpush1.xpose.msra.mxu0 0.0
        %592 = vmatprep.subr.mxu0 0.0
        %593 = vmatpush1.xpose.msra.mxu0 0.0
        %594 = vmatprep.subr.mxu0 0.0
        %595 = vmatpush1.xpose.msra.mxu0 0.0
        %596 = vmatprep.subr.mxu0 0.0
        %597 = vmatpush1.xpose.msra.mxu0 0.0
        %598 = vmatprep.subr.mxu0 0.0
        %599 = vmatpush1.xpose.msra.mxu0 0.0
        %600 = vmatprep.subr.mxu0 0.0
        %601 = vmatpush1.xpose.msra.mxu0 0.0
        %602 = vmatprep.mubr.f32.mxu0 0.0
        %603 = vmatmul.mubr.f32.gmra.mrb[0].mxu0 %v533
        %v604 = vpop.f32.mrb[0].mxu0
        %v605 = vadd.f32 0.0, %v604
        %v606 = vpop.f32.mrb[0].mxu0
        %607 = vdwg.mxu0
        %v608 = vsel %vm530, %v605, -1e+10
        %v609 = vsel %vm531, %v608, -inf
        %610 = vmax.xlane.f32.xlu0 %v609
        %v611 = vpop.xlane.xlu0 %610
        %v612 = vsub.f32 %v608, %v611
        %v613 = vmul.f32 %v612, 1.442695
        %v614 = vpow.pop %v613
        %v615 = vsel %vm531, %v614, 0.0
        %616 = vadd.xlane.f32.xlu0 %v615
        %v617 = vpop.xlane.xlu0 %616
        %v618 = vrcp.pop %v617
        %v619 = vmul.f32 %v614, %v618
        %v621 = vsel %vm531, %v619, 0
        %623 = vmatprep.subr.mxu0 0.0
        %624 = vmatpush1.msra.mxu0 %v523
        %625 = vmatprep.subr.mxu0 0.0
        %626 = vmatpush1.msra.mxu0 0.0
        %627 = vmatprep.subr.mxu0 0.0
        %628 = vmatpush1.msra.mxu0 0.0
        %629 = vmatprep.subr.mxu0 0.0
        %630 = vmatpush1.msra.mxu0 0.0
        %631 = vmatprep.subr.mxu0 0.0
        %632 = vmatpush1.msra.mxu0 0.0
        %633 = vmatprep.subr.mxu0 0.0
        %634 = vmatpush1.msra.mxu0 0.0
        %635 = vmatprep.subr.mxu0 0.0
        %636 = vmatpush1.msra.mxu0 0.0
        %637 = vmatprep.subr.mxu0 0.0
        %638 = vmatpush1.msra.mxu0 0.0
        %639 = vmatprep.subr.mxu0 0.0
        %640 = vmatpush1.msra.mxu0 0.0
        %641 = vmatprep.subr.mxu0 0.0
        %642 = vmatpush1.msra.mxu0 0.0
        %643 = vmatprep.subr.mxu0 0.0
        %644 = vmatpush1.msra.mxu0 0.0
        %645 = vmatprep.subr.mxu0 0.0
        %646 = vmatpush1.msra.mxu0 0.0
        %647 = vmatprep.subr.mxu0 0.0
        %648 = vmatpush1.msra.mxu0 0.0
        %649 = vmatprep.subr.mxu0 0.0
        %650 = vmatpush1.msra.mxu0 0.0
        %651 = vmatprep.subr.mxu0 0.0
        %652 = vmatpush1.msra.mxu0 0.0
        %653 = vmatprep.subr.mxu0 0.0
        %654 = vmatpush1.msra.mxu0 0.0
        %655 = vmatprep.subr.mxu0 0.0
        %656 = vmatpush1.msra.mxu0 0.0
        %657 = vmatprep.subr.mxu0 0.0
        %658 = vmatpush1.msra.mxu0 0.0
        %659 = vmatprep.subr.mxu0 0.0
        %660 = vmatpush1.msra.mxu0 0.0
        %661 = vmatprep.subr.mxu0 0.0
        %662 = vmatpush1.msra.mxu0 0.0
        %663 = vmatprep.subr.mxu0 0.0
        %664 = vmatpush1.msra.mxu0 0.0
        %665 = vmatprep.subr.mxu0 0.0
        %666 = vmatpush1.msra.mxu0 0.0
        %667 = vmatprep.subr.mxu0 0.0
        %668 = vmatpush1.msra.mxu0 0.0
        %669 = vmatprep.subr.mxu0 0.0
        %670 = vmatpush1.msra.mxu0 0.0
        %671 = vmatprep.subr.mxu0 0.0
        %672 = vmatpush1.msra.mxu0 0.0
        %673 = vmatprep.subr.mxu0 0.0
        %674 = vmatpush1.msra.mxu0 0.0
        %675 = vmatprep.subr.mxu0 0.0
        %676 = vmatpush1.msra.mxu0 0.0
        %677 = vmatprep.subr.mxu0 0.0
        %678 = vmatpush1.msra.mxu0 0.0
        %679 = vmatprep.subr.mxu0 0.0
        %680 = vmatpush1.msra.mxu0 0.0
        %681 = vmatprep.subr.mxu0 0.0
        %682 = vmatpush1.msra.mxu0 0.0
        %683 = vmatprep.subr.mxu0 0.0
        %684 = vmatpush1.msra.mxu0 0.0
        %685 = vmatprep.subr.mxu0 0.0
        %686 = vmatpush1.msra.mxu0 0.0
        %687 = vmatprep.mubr.f32.mxu0 0.0
        %688 = vmatmul.mubr.f32.gmra.mrb[0].mxu0 %v621
        %v689 = vpop.f32.mrb[0].mxu0
        %v690 = vadd.f32 0.0, %v689
        %v691 = vpop.f32.mrb[0].mxu0
        %692 = vdwg.mxu0
        %693 = vst.msk [vmem:[#allocation2] sm:$0xff] %vm531, %v690
        %694 = vrot.lane.b32.xlu0 %v377, 120
        %v695 = vpop.permute.xlu0 %694
        %696 = vrot.lane.b32.xlu0 %v449, 120
        %v697 = vpop.permute.xlu0 %696
        %v698 = vsel %vm531, %v695, 0
        %v700 = vsel %vm531, %v697, 0
        %702 = vmatprep.subr.mxu0 0.0
        %703 = vmatpush1.xpose.msra.mxu0 %v700
        %704 = vmatprep.subr.mxu0 0.0
        %705 = vmatpush1.xpose.msra.mxu0 0.0
        %706 = vmatprep.subr.mxu0 0.0
        %707 = vmatpush1.xpose.msra.mxu0 0.0
        %708 = vmatprep.subr.mxu0 0.0
        %709 = vmatpush1.xpose.msra.mxu0 0.0
        %710 = vmatprep.subr.mxu0 0.0
        %711 = vmatpush1.xpose.msra.mxu0 0.0
        %712 = vmatprep.subr.mxu0 0.0
        %713 = vmatpush1.xpose.msra.mxu0 0.0
        %714 = vmatprep.subr.mxu0 0.0
        %715 = vmatpush1.xpose.msra.mxu0 0.0
        %716 = vmatprep.subr.mxu0 0.0
        %717 = vmatpush1.xpose.msra.mxu0 0.0
        %718 = vmatprep.subr.mxu0 0.0
        %719 = vmatpush1.xpose.msra.mxu0 0.0
        %720 = vmatprep.subr.mxu0 0.0
        %721 = vmatpush1.xpose.msra.mxu0 0.0
        %722 = vmatprep.subr.mxu0 0.0
        %723 = vmatpush1.xpose.msra.mxu0 0.0
        %724 = vmatprep.subr.mxu0 0.0
        %725 = vmatpush1.xpose.msra.mxu0 0.0
        %726 = vmatprep.subr.mxu0 0.0
        %727 = vmatpush1.xpose.msra.mxu0 0.0
        %728 = vmatprep.subr.mxu0 0.0
        %729 = vmatpush1.xpose.msra.mxu0 0.0
        %730 = vmatprep.subr.mxu0 0.0
        %731 = vmatpush1.xpose.msra.mxu0 0.0
        %732 = vmatprep.subr.mxu0 0.0
        %733 = vmatpush1.xpose.msra.mxu0 0.0
        %734 = vmatprep.subr.mxu0 0.0
        %735 = vmatpush1.xpose.msra.mxu0 0.0
        %736 = vmatprep.subr.mxu0 0.0
        %737 = vmatpush1.xpose.msra.mxu0 0.0
        %738 = vmatprep.subr.mxu0 0.0
        %739 = vmatpush1.xpose.msra.mxu0 0.0
        %740 = vmatprep.subr.mxu0 0.0
        %741 = vmatpush1.xpose.msra.mxu0 0.0
        %742 = vmatprep.subr.mxu0 0.0
        %743 = vmatpush1.xpose.msra.mxu0 0.0
        %744 = vmatprep.subr.mxu0 0.0
        %745 = vmatpush1.xpose.msra.mxu0 0.0
        %746 = vmatprep.subr.mxu0 0.0
        %747 = vmatpush1.xpose.msra.mxu0 0.0
        %748 = vmatprep.subr.mxu0 0.0
        %749 = vmatpush1.xpose.msra.mxu0 0.0
        %750 = vmatprep.subr.mxu0 0.0
        %751 = vmatpush1.xpose.msra.mxu0 0.0
        %752 = vmatprep.subr.mxu0 0.0
        %753 = vmatpush1.xpose.msra.mxu0 0.0
        %754 = vmatprep.subr.mxu0 0.0
        %755 = vmatpush1.xpose.msra.mxu0 0.0
        %756 = vmatprep.subr.mxu0 0.0
        %757 = vmatpush1.xpose.msra.mxu0 0.0
        %758 = vmatprep.subr.mxu0 0.0
        %759 = vmatpush1.xpose.msra.mxu0 0.0
        %760 = vmatprep.subr.mxu0 0.0
        %761 = vmatpush1.xpose.msra.mxu0 0.0
        %762 = vmatprep.subr.mxu0 0.0
        %763 = vmatpush1.xpose.msra.mxu0 0.0
        %764 = vmatprep.subr.mxu0 0.0
        %765 = vmatpush1.xpose.msra.mxu0 0.0
        %766 = vmatprep.mubr.f32.mxu0 0.0
        %767 = vmatmul.mubr.f32.gmra.mrb[0].mxu0 %v698
        %v768 = vpop.f32.mrb[0].mxu0
        %v769 = vadd.f32 0.0, %v768
        %v770 = vpop.f32.mrb[0].mxu0
        %771 = vdwg.mxu0
        %v772 = vsel %vm530, %v769, -1e+10
        %v773 = vsel %vm531, %v772, -inf
        %774 = vmax.xlane.f32.xlu0 %v773
        %v775 = vpop.xlane.xlu0 %774
        %v776 = vsub.f32 %v772, %v775
        %v777 = vmul.f32 %v776, 1.442695
        %v778 = vpow.pop %v777
        %v779 = vsel %vm531, %v778, 0.0
        %780 = vadd.xlane.f32.xlu0 %v779
        %v781 = vpop.xlane.xlu0 %780
        %v782 = vrcp.pop %v781
        %v783 = vmul.f32 %v778, %v782
        %785 = vrot.lane.b32.xlu0 %v523, 120
        %v786 = vpop.permute.xlu0 %785
        %v789 = vsel %vm531, %v783, 0
        %791 = vmatprep.subr.mxu0 0.0
        %792 = vmatpush1.msra.mxu0 %v786
        %793 = vmatprep.subr.mxu0 0.0
        %794 = vmatpush1.msra.mxu0 0.0
        %795 = vmatprep.subr.mxu0 0.0
        %796 = vmatpush1.msra.mxu0 0.0
        %797 = vmatprep.subr.mxu0 0.0
        %798 = vmatpush1.msra.mxu0 0.0
        %799 = vmatprep.subr.mxu0 0.0
        %800 = vmatpush1.msra.mxu0 0.0
        %801 = vmatprep.subr.mxu0 0.0
        %802 = vmatpush1.msra.mxu0 0.0
        %803 = vmatprep.subr.mxu0 0.0
        %804 = vmatpush1.msra.mxu0 0.0
        %805 = vmatprep.subr.mxu0 0.0
        %806 = vmatpush1.msra.mxu0 0.0
        %807 = vmatprep.subr.mxu0 0.0
        %808 = vmatpush1.msra.mxu0 0.0
        %809 = vmatprep.subr.mxu0 0.0
        %810 = vmatpush1.msra.mxu0 0.0
        %811 = vmatprep.subr.mxu0 0.0
        %812 = vmatpush1.msra.mxu0 0.0
        %813 = vmatprep.subr.mxu0 0.0
        %814 = vmatpush1.msra.mxu0 0.0
        %815 = vmatprep.subr.mxu0 0.0
        %816 = vmatpush1.msra.mxu0 0.0
        %817 = vmatprep.subr.mxu0 0.0
        %818 = vmatpush1.msra.mxu0 0.0
        %819 = vmatprep.subr.mxu0 0.0
        %820 = vmatpush1.msra.mxu0 0.0
        %821 = vmatprep.subr.mxu0 0.0
        %822 = vmatpush1.msra.mxu0 0.0
        %823 = vmatprep.subr.mxu0 0.0
        %824 = vmatpush1.msra.mxu0 0.0
        %825 = vmatprep.subr.mxu0 0.0
        %826 = vmatpush1.msra.mxu0 0.0
        %827 = vmatprep.subr.mxu0 0.0
        %828 = vmatpush1.msra.mxu0 0.0
        %829 = vmatprep.subr.mxu0 0.0
        %830 = vmatpush1.msra.mxu0 0.0
        %831 = vmatprep.subr.mxu0 0.0
        %832 = vmatpush1.msra.mxu0 0.0
        %833 = vmatprep.subr.mxu0 0.0
        %834 = vmatpush1.msra.mxu0 0.0
        %835 = vmatprep.subr.mxu0 0.0
        %836 = vmatpush1.msra.mxu0 0.0
        %837 = vmatprep.subr.mxu0 0.0
        %838 = vmatpush1.msra.mxu0 0.0
        %839 = vmatprep.subr.mxu0 0.0
        %840 = vmatpush1.msra.mxu0 0.0
        %841 = vmatprep.subr.mxu0 0.0
        %842 = vmatpush1.msra.mxu0 0.0
        %843 = vmatprep.subr.mxu0 0.0
        %844 = vmatpush1.msra.mxu0 0.0
        %845 = vmatprep.subr.mxu0 0.0
        %846 = vmatpush1.msra.mxu0 0.0
        %847 = vmatprep.subr.mxu0 0.0
        %848 = vmatpush1.msra.mxu0 0.0
        %849 = vmatprep.subr.mxu0 0.0
        %850 = vmatpush1.msra.mxu0 0.0
        %851 = vmatprep.subr.mxu0 0.0
        %852 = vmatpush1.msra.mxu0 0.0
        %853 = vmatprep.subr.mxu0 0.0
        %854 = vmatpush1.msra.mxu0 0.0
        %855 = vmatprep.mubr.f32.mxu0 0.0
        %856 = vmatmul.mubr.f32.gmra.mrb[0].mxu0 %v789
        %v857 = vpop.f32.mrb[0].mxu0
        %v858 = vadd.f32 0.0, %v857
        %v859 = vpop.f32.mrb[0].mxu0
        %860 = vdwg.mxu0
        %862 = vrot.lane.b32.xlu0 %v858, 8
        %v863 = vpop.permute.xlu0 %862
        %vm865 = vcmask 130112
        %866 = vst.msk [vmem:[#allocation2] sm:$0xff] %vm865, %v863
        %867 = vrot.lane.b32.xlu0 %v377, 112
        %v868 = vpop.permute.xlu0 %867
        %869 = vrot.lane.b32.xlu0 %v449, 112
        %v870 = vpop.permute.xlu0 %869
        %v871 = vsel %vm531, %v868, 0
        %v873 = vsel %vm531, %v870, 0
        %875 = vmatprep.subr.mxu0 0.0
        %876 = vmatpush1.xpose.msra.mxu0 %v873
        %877 = vmatprep.subr.mxu0 0.0
        %878 = vmatpush1.xpose.msra.mxu0 0.0
        %879 = vmatprep.subr.mxu0 0.0
        %880 = vmatpush1.xpose.msra.mxu0 0.0
        %881 = vmatprep.subr.mxu0 0.0
        %882 = vmatpush1.xpose.msra.mxu0 0.0
        %883 = vmatprep.subr.mxu0 0.0
        %884 = vmatpush1.xpose.msra.mxu0 0.0
        %885 = vmatprep.subr.mxu0 0.0
        %886 = vmatpush1.xpose.msra.mxu0 0.0
        %887 = vmatprep.subr.mxu0 0.0
        %888 = vmatpush1.xpose.msra.mxu0 0.0
        %889 = vmatprep.subr.mxu0 0.0
        %890 = vmatpush1.xpose.msra.mxu0 0.0
        %891 = vmatprep.subr.mxu0 0.0
        %892 = vmatpush1.xpose.msra.mxu0 0.0
        %893 = vmatprep.subr.mxu0 0.0
        %894 = vmatpush1.xpose.msra.mxu0 0.0
        %895 = vmatprep.subr.mxu0 0.0
        %896 = vmatpush1.xpose.msra.mxu0 0.0
        %897 = vmatprep.subr.mxu0 0.0
        %898 = vmatpush1.xpose.msra.mxu0 0.0
        %899 = vmatprep.subr.mxu0 0.0
        %900 = vmatpush1.xpose.msra.mxu0 0.0
        %901 = vmatprep.subr.mxu0 0.0
        %902 = vmatpush1.xpose.msra.mxu0 0.0
        %903 = vmatprep.subr.mxu0 0.0
        %904 = vmatpush1.xpose.msra.mxu0 0.0
        %905 = vmatprep.subr.mxu0 0.0
        %906 = vmatpush1.xpose.msra.mxu0 0.0
        %907 = vmatprep.subr.mxu0 0.0
        %908 = vmatpush1.xpose.msra.mxu0 0.0
        %909 = vmatprep.subr.mxu0 0.0
        %910 = vmatpush1.xpose.msra.mxu0 0.0
        %911 = vmatprep.subr.mxu0 0.0
        %912 = vmatpush1.xpose.msra.mxu0 0.0
        %913 = vmatprep.subr.mxu0 0.0
        %914 = vmatpush1.xpose.msra.mxu0 0.0
        %915 = vmatprep.subr.mxu0 0.0
        %916 = vmatpush1.xpose.msra.mxu0 0.0
        %917 = vmatprep.subr.mxu0 0.0
        %918 = vmatpush1.xpose.msra.mxu0 0.0
        %919 = vmatprep.subr.mxu0 0.0
        %920 = vmatpush1.xpose.msra.mxu0 0.0
        %921 = vmatprep.subr.mxu0 0.0
        %922 = vmatpush1.xpose.msra.mxu0 0.0
        %923 = vmatprep.subr.mxu0 0.0
        %924 = vmatpush1.xpose.msra.mxu0 0.0
        %925 = vmatprep.subr.mxu0 0.0
        %926 = vmatpush1.xpose.msra.mxu0 0.0
        %927 = vmatprep.subr.mxu0 0.0
        %928 = vmatpush1.xpose.msra.mxu0 0.0
        %929 = vmatprep.subr.mxu0 0.0
        %930 = vmatpush1.xpose.msra.mxu0 0.0
        %931 = vmatprep.subr.mxu0 0.0
        %932 = vmatpush1.xpose.msra.mxu0 0.0
        %933 = vmatprep.subr.mxu0 0.0
        %934 = vmatpush1.xpose.msra.mxu0 0.0
        %935 = vmatprep.subr.mxu0 0.0
        %936 = vmatpush1.xpose.msra.mxu0 0.0
        %937 = vmatprep.subr.mxu0 0.0
        %938 = vmatpush1.xpose.msra.mxu0 0.0
        %939 = vmatprep.mubr.f32.mxu0 0.0
        %940 = vmatmul.mubr.f32.gmra.mrb[0].mxu0 %v871
        %v941 = vpop.f32.mrb[0].mxu0
        %v942 = vadd.f32 0.0, %v941
        %v943 = vpop.f32.mrb[0].mxu0
        %944 = vdwg.mxu0
        %v945 = vsel %vm530, %v942, -1e+10
        %v946 = vsel %vm531, %v945, -inf
        %947 = vmax.xlane.f32.xlu0 %v946
        %v948 = vpop.xlane.xlu0 %947
        %v949 = vsub.f32 %v945, %v948
        %v950 = vmul.f32 %v949, 1.442695
        %v951 = vpow.pop %v950
        %v952 = vsel %vm531, %v951, 0.0
        %953 = vadd.xlane.f32.xlu0 %v952
        %v954 = vpop.xlane.xlu0 %953
        %v955 = vrcp.pop %v954
        %v956 = vmul.f32 %v951, %v955
        %957 = vrot.lane.b32.xlu0 %v523, 112
        %v958 = vpop.permute.xlu0 %957
        %v961 = vsel %vm531, %v956, 0
        %963 = vmatprep.subr.mxu0 0.0
        %964 = vmatpush1.msra.mxu0 %v958
        %965 = vmatprep.subr.mxu0 0.0
        %966 = vmatpush1.msra.mxu0 0.0
        %967 = vmatprep.subr.mxu0 0.0
        %968 = vmatpush1.msra.mxu0 0.0
        %969 = vmatprep.subr.mxu0 0.0
        %970 = vmatpush1.msra.mxu0 0.0
        %971 = vmatprep.subr.mxu0 0.0
        %972 = vmatpush1.msra.mxu0 0.0
        %973 = vmatprep.subr.mxu0 0.0
        %974 = vmatpush1.msra.mxu0 0.0
        %975 = vmatprep.subr.mxu0 0.0
        %976 = vmatpush1.msra.mxu0 0.0
        %977 = vmatprep.subr.mxu0 0.0
        %978 = vmatpush1.msra.mxu0 0.0
        %979 = vmatprep.subr.mxu0 0.0
        %980 = vmatpush1.msra.mxu0 0.0
        %981 = vmatprep.subr.mxu0 0.0
        %982 = vmatpush1.msra.mxu0 0.0
        %983 = vmatprep.subr.mxu0 0.0
        %984 = vmatpush1.msra.mxu0 0.0
        %985 = vmatprep.subr.mxu0 0.0
        %986 = vmatpush1.msra.mxu0 0.0
        %987 = vmatprep.subr.mxu0 0.0
        %988 = vmatpush1.msra.mxu0 0.0
        %989 = vmatprep.subr.mxu0 0.0
        %990 = vmatpush1.msra.mxu0 0.0
        %991 = vmatprep.subr.mxu0 0.0
        %992 = vmatpush1.msra.mxu0 0.0
        %993 = vmatprep.subr.mxu0 0.0
        %994 = vmatpush1.msra.mxu0 0.0
        %995 = vmatprep.subr.mxu0 0.0
        %996 = vmatpush1.msra.mxu0 0.0
        %997 = vmatprep.subr.mxu0 0.0
        %998 = vmatpush1.msra.mxu0 0.0
        %999 = vmatprep.subr.mxu0 0.0
        %1000 = vmatpush1.msra.mxu0 0.0
        %1001 = vmatprep.subr.mxu0 0.0
        %1002 = vmatpush1.msra.mxu0 0.0
        %1003 = vmatprep.subr.mxu0 0.0
        %1004 = vmatpush1.msra.mxu0 0.0
        %1005 = vmatprep.subr.mxu0 0.0
        %1006 = vmatpush1.msra.mxu0 0.0
        %1007 = vmatprep.subr.mxu0 0.0
        %1008 = vmatpush1.msra.mxu0 0.0
        %1009 = vmatprep.subr.mxu0 0.0
        %1010 = vmatpush1.msra.mxu0 0.0
        %1011 = vmatprep.subr.mxu0 0.0
        %1012 = vmatpush1.msra.mxu0 0.0
        %1013 = vmatprep.subr.mxu0 0.0
        %1014 = vmatpush1.msra.mxu0 0.0
        %1015 = vmatprep.subr.mxu0 0.0
        %1016 = vmatpush1.msra.mxu0 0.0
        %1017 = vmatprep.subr.mxu0 0.0
        %1018 = vmatpush1.msra.mxu0 0.0
        %1019 = vmatprep.subr.mxu0 0.0
        %1020 = vmatpush1.msra.mxu0 0.0
        %1021 = vmatprep.subr.mxu0 0.0
        %1022 = vmatpush1.msra.mxu0 0.0
        %1023 = vmatprep.subr.mxu0 0.0
        %1024 = vmatpush1.msra.mxu0 0.0
        %1025 = vmatprep.subr.mxu0 0.0
        %1026 = vmatpush1.msra.mxu0 0.0
        %1027 = vmatprep.mubr.f32.mxu0 0.0
        %1028 = vmatmul.mubr.f32.gmra.mrb[0].mxu0 %v961
        %v1029 = vpop.f32.mrb[0].mxu0
        %v1030 = vadd.f32 0.0, %v1029
        %v1031 = vpop.f32.mrb[0].mxu0
        %1032 = vdwg.mxu0
        %1034 = vrot.lane.b32.xlu0 %v1030, 16
        %v1035 = vpop.permute.xlu0 %1034
        %vm1037 = vcmask 195712
        %1038 = vst.msk [vmem:[#allocation2] sm:$0xff] %vm1037, %v1035
        %1039 = vrot.lane.b32.xlu0 %v377, 104
        %v1040 = vpop.permute.xlu0 %1039
        %1041 = vrot.lane.b32.xlu0 %v449, 104
        %v1042 = vpop.permute.xlu0 %1041
        %v1043 = vsel %vm531, %v1040, 0
        %v1045 = vsel %vm531, %v1042, 0
        %1047 = vmatprep.subr.mxu0 0.0
        %1048 = vmatpush1.xpose.msra.mxu0 %v1045
        %1049 = vmatprep.subr.mxu0 0.0
        %1050 = vmatpush1.xpose.msra.mxu0 0.0
        %1051 = vmatprep.subr.mxu0 0.0
        %1052 = vmatpush1.xpose.msra.mxu0 0.0
        %1053 = vmatprep.subr.mxu0 0.0
        %1054 = vmatpush1.xpose.msra.mxu0 0.0
        %1055 = vmatprep.subr.mxu0 0.0
        %1056 = vmatpush1.xpose.msra.mxu0 0.0
        %1057 = vmatprep.subr.mxu0 0.0
        %1058 = vmatpush1.xpose.msra.mxu0 0.0
        %1059 = vmatprep.subr.mxu0 0.0
        %1060 = vmatpush1.xpose.msra.mxu0 0.0
        %1061 = vmatprep.subr.mxu0 0.0
        %1062 = vmatpush1.xpose.msra.mxu0 0.0
        %1063 = vmatprep.subr.mxu0 0.0
        %1064 = vmatpush1.xpose.msra.mxu0 0.0
        %1065 = vmatprep.subr.mxu0 0.0
        %1066 = vmatpush1.xpose.msra.mxu0 0.0
        %1067 = vmatprep.subr.mxu0 0.0
        %1068 = vmatpush1.xpose.msra.mxu0 0.0
        %1069 = vmatprep.subr.mxu0 0.0
        %1070 = vmatpush1.xpose.msra.mxu0 0.0
        %1071 = vmatprep.subr.mxu0 0.0
        %1072 = vmatpush1.xpose.msra.mxu0 0.0
        %1073 = vmatprep.subr.mxu0 0.0
        %1074 = vmatpush1.xpose.msra.mxu0 0.0
        %1075 = vmatprep.subr.mxu0 0.0
        %1076 = vmatpush1.xpose.msra.mxu0 0.0
        %1077 = vmatprep.subr.mxu0 0.0
        %1078 = vmatpush1.xpose.msra.mxu0 0.0
        %1079 = vmatprep.subr.mxu0 0.0
        %1080 = vmatpush1.xpose.msra.mxu0 0.0
        %1081 = vmatprep.subr.mxu0 0.0
        %1082 = vmatpush1.xpose.msra.mxu0 0.0
        %1083 = vmatprep.subr.mxu0 0.0
        %1084 = vmatpush1.xpose.msra.mxu0 0.0
        %1085 = vmatprep.subr.mxu0 0.0
        %1086 = vmatpush1.xpose.msra.mxu0 0.0
        %1087 = vmatprep.subr.mxu0 0.0
        %1088 = vmatpush1.xpose.msra.mxu0 0.0
        %1089 = vmatprep.subr.mxu0 0.0
        %1090 = vmatpush1.xpose.msra.mxu0 0.0
        %1091 = vmatprep.subr.mxu0 0.0
        %1092 = vmatpush1.xpose.msra.mxu0 0.0
        %1093 = vmatprep.subr.mxu0 0.0
        %1094 = vmatpush1.xpose.msra.mxu0 0.0
        %1095 = vmatprep.subr.mxu0 0.0
        %1096 = vmatpush1.xpose.msra.mxu0 0.0
        %1097 = vmatprep.subr.mxu0 0.0
        %1098 = vmatpush1.xpose.msra.mxu0 0.0
        %1099 = vmatprep.subr.mxu0 0.0
        %1100 = vmatpush1.xpose.msra.mxu0 0.0
        %1101 = vmatprep.subr.mxu0 0.0
        %1102 = vmatpush1.xpose.msra.mxu0 0.0
        %1103 = vmatprep.subr.mxu0 0.0
        %1104 = vmatpush1.xpose.msra.mxu0 0.0
        %1105 = vmatprep.subr.mxu0 0.0
        %1106 = vmatpush1.xpose.msra.mxu0 0.0
        %1107 = vmatprep.subr.mxu0 0.0
        %1108 = vmatpush1.xpose.msra.mxu0 0.0
        %1109 = vmatprep.subr.mxu0 0.0
        %1110 = vmatpush1.xpose.msra.mxu0 0.0
        %1111 = vmatprep.mubr.f32.mxu0 0.0
        %1112 = vmatmul.mubr.f32.gmra.mrb[0].mxu0 %v1043
        %v1113 = vpop.f32.mrb[0].mxu0
        %v1114 = vadd.f32 0.0, %v1113
        %v1115 = vpop.f32.mrb[0].mxu0
        %1116 = vdwg.mxu0
        %v1117 = vsel %vm530, %v1114, -1e+10
        %v1118 = vsel %vm531, %v1117, -inf
        %1119 = vmax.xlane.f32.xlu0 %v1118
        %v1120 = vpop.xlane.xlu0 %1119
        %v1121 = vsub.f32 %v1117, %v1120
        %v1122 = vmul.f32 %v1121, 1.442695
        %v1123 = vpow.pop %v1122
        %v1124 = vsel %vm531, %v1123, 0.0
        %1125 = vadd.xlane.f32.xlu0 %v1124
        %v1126 = vpop.xlane.xlu0 %1125
        %v1127 = vrcp.pop %v1126
        %v1128 = vmul.f32 %v1123, %v1127
        %1129 = vrot.lane.b32.xlu0 %v523, 104
        %v1130 = vpop.permute.xlu0 %1129
        %v1133 = vsel %vm531, %v1128, 0
        %1135 = vmatprep.subr.mxu0 0.0
        %1136 = vmatpush1.msra.mxu0 %v1130
        %1137 = vmatprep.subr.mxu0 0.0
        %1138 = vmatpush1.msra.mxu0 0.0
        %1139 = vmatprep.subr.mxu0 0.0
        %1140 = vmatpush1.msra.mxu0 0.0
        %1141 = vmatprep.subr.mxu0 0.0
        %1142 = vmatpush1.msra.mxu0 0.0
        %1143 = vmatprep.subr.mxu0 0.0
        %1144 = vmatpush1.msra.mxu0 0.0
        %1145 = vmatprep.subr.mxu0 0.0
        %1146 = vmatpush1.msra.mxu0 0.0
        %1147 = vmatprep.subr.mxu0 0.0
        %1148 = vmatpush1.msra.mxu0 0.0
        %1149 = vmatprep.subr.mxu0 0.0
        %1150 = vmatpush1.msra.mxu0 0.0
        %1151 = vmatprep.subr.mxu0 0.0
        %1152 = vmatpush1.msra.mxu0 0.0
        %1153 = vmatprep.subr.mxu0 0.0
        %1154 = vmatpush1.msra.mxu0 0.0
        %1155 = vmatprep.subr.mxu0 0.0
        %1156 = vmatpush1.msra.mxu0 0.0
        %1157 = vmatprep.subr.mxu0 0.0
        %1158 = vmatpush1.msra.mxu0 0.0
        %1159 = vmatprep.subr.mxu0 0.0
        %1160 = vmatpush1.msra.mxu0 0.0
        %1161 = vmatprep.subr.mxu0 0.0
        %1162 = vmatpush1.msra.mxu0 0.0
        %1163 = vmatprep.subr.mxu0 0.0
        %1164 = vmatpush1.msra.mxu0 0.0
        %1165 = vmatprep.subr.mxu0 0.0
        %1166 = vmatpush1.msra.mxu0 0.0
        %1167 = vmatprep.subr.mxu0 0.0
        %1168 = vmatpush1.msra.mxu0 0.0
        %1169 = vmatprep.subr.mxu0 0.0
        %1170 = vmatpush1.msra.mxu0 0.0
        %1171 = vmatprep.subr.mxu0 0.0
        %1172 = vmatpush1.msra.mxu0 0.0
        %1173 = vmatprep.subr.mxu0 0.0
        %1174 = vmatpush1.msra.mxu0 0.0
        %1175 = vmatprep.subr.mxu0 0.0
        %1176 = vmatpush1.msra.mxu0 0.0
        %1177 = vmatprep.subr.mxu0 0.0
        %1178 = vmatpush1.msra.mxu0 0.0
        %1179 = vmatprep.subr.mxu0 0.0
        %1180 = vmatpush1.msra.mxu0 0.0
        %1181 = vmatprep.subr.mxu0 0.0
        %1182 = vmatpush1.msra.mxu0 0.0
        %1183 = vmatprep.subr.mxu0 0.0
        %1184 = vmatpush1.msra.mxu0 0.0
        %1185 = vmatprep.subr.mxu0 0.0
        %1186 = vmatpush1.msra.mxu0 0.0
        %1187 = vmatprep.subr.mxu0 0.0
        %1188 = vmatpush1.msra.mxu0 0.0
        %1189 = vmatprep.subr.mxu0 0.0
        %1190 = vmatpush1.msra.mxu0 0.0
        %1191 = vmatprep.subr.mxu0 0.0
        %1192 = vmatpush1.msra.mxu0 0.0
        %1193 = vmatprep.subr.mxu0 0.0
        %1194 = vmatpush1.msra.mxu0 0.0
        %1195 = vmatprep.subr.mxu0 0.0
        %1196 = vmatpush1.msra.mxu0 0.0
        %1197 = vmatprep.subr.mxu0 0.0
        %1198 = vmatpush1.msra.mxu0 0.0
        %1199 = vmatprep.mubr.f32.mxu0 0.0
        %1200 = vmatmul.mubr.f32.gmra.mrb[0].mxu0 %v1133
        %v1201 = vpop.f32.mrb[0].mxu0
        %v1202 = vadd.f32 0.0, %v1201
        %v1203 = vpop.f32.mrb[0].mxu0
        %1204 = vdwg.mxu0
        %1206 = vrot.lane.b32.xlu0 %v1202, 24
        %v1207 = vpop.permute.xlu0 %1206
        %vm1209 = vcmask 261312
        %1210 = vst.msk [vmem:[#allocation2] sm:$0xff] %vm1209, %v1207
        %v1211 = vld [vmem:[#allocation2] sm:$0xff]
        %v1212 = vld [vmem:[#allocation11] sm:$0xff]
        %v1213 = vld [vmem:[#allocation11 + $0x8] sm:$0xff]
        %v1214 = vld [vmem:[#allocation11 + $0x10] sm:$0xff]
        %v1215 = vld [vmem:[#allocation11 + $0x18] sm:$0xff]
        %v1217 = vsel %vm303, %v1211, 0
        %1219 = vmatprep.subr.mxu0 0.0
        %1220 = vmatpush1.msra.mxu0 %v1212
        %1221 = vmatprep.subr.mxu0 0.0
        %1222 = vmatpush1.msra.mxu0 %v1213
        %1223 = vmatprep.subr.mxu0 0.0
        %1224 = vmatpush1.msra.mxu0 %v1214
        %1225 = vmatprep.subr.mxu0 0.0
        %1226 = vmatpush1.msra.mxu0 %v1215
        %1227 = vmatprep.subr.mxu0 0.0
        %1228 = vmatpush1.msra.mxu0 0.0
        %1229 = vmatprep.subr.mxu0 0.0
        %1230 = vmatpush1.msra.mxu0 0.0
        %1231 = vmatprep.subr.mxu0 0.0
        %1232 = vmatpush1.msra.mxu0 0.0
        %1233 = vmatprep.subr.mxu0 0.0
        %1234 = vmatpush1.msra.mxu0 0.0
        %1235 = vmatprep.subr.mxu0 0.0
        %1236 = vmatpush1.msra.mxu0 0.0
        %1237 = vmatprep.subr.mxu0 0.0
        %1238 = vmatpush1.msra.mxu0 0.0
        %1239 = vmatprep.subr.mxu0 0.0
        %1240 = vmatpush1.msra.mxu0 0.0
        %1241 = vmatprep.subr.mxu0 0.0
        %1242 = vmatpush1.msra.mxu0 0.0
        %1243 = vmatprep.subr.mxu0 0.0
        %1244 = vmatpush1.msra.mxu0 0.0
        %1245 = vmatprep.subr.mxu0 0.0
        %1246 = vmatpush1.msra.mxu0 0.0
        %1247 = vmatprep.subr.mxu0 0.0
        %1248 = vmatpush1.msra.mxu0 0.0
        %1249 = vmatprep.subr.mxu0 0.0
        %1250 = vmatpush1.msra.mxu0 0.0
        %1251 = vmatprep.subr.mxu0 0.0
        %1252 = vmatpush1.msra.mxu0 0.0
        %1253 = vmatprep.subr.mxu0 0.0
        %1254 = vmatpush1.msra.mxu0 0.0
        %1255 = vmatprep.subr.mxu0 0.0
        %1256 = vmatpush1.msra.mxu0 0.0
        %1257 = vmatprep.subr.mxu0 0.0
        %1258 = vmatpush1.msra.mxu0 0.0
        %1259 = vmatprep.subr.mxu0 0.0
        %1260 = vmatpush1.msra.mxu0 0.0
        %1261 = vmatprep.subr.mxu0 0.0
        %1262 = vmatpush1.msra.mxu0 0.0
        %1263 = vmatprep.subr.mxu0 0.0
        %1264 = vmatpush1.msra.mxu0 0.0
        %1265 = vmatprep.subr.mxu0 0.0
        %1266 = vmatpush1.msra.mxu0 0.0
        %1267 = vmatprep.subr.mxu0 0.0
        %1268 = vmatpush1.msra.mxu0 0.0
        %1269 = vmatprep.subr.mxu0 0.0
        %1270 = vmatpush1.msra.mxu0 0.0
        %1271 = vmatprep.subr.mxu0 0.0
        %1272 = vmatpush1.msra.mxu0 0.0
        %1273 = vmatprep.subr.mxu0 0.0
        %1274 = vmatpush1.msra.mxu0 0.0
        %1275 = vmatprep.subr.mxu0 0.0
        %1276 = vmatpush1.msra.mxu0 0.0
        %1277 = vmatprep.subr.mxu0 0.0
        %1278 = vmatpush1.msra.mxu0 0.0
        %1279 = vmatprep.subr.mxu0 0.0
        %1280 = vmatpush1.msra.mxu0 0.0
        %1281 = vmatprep.subr.mxu0 0.0
        %1282 = vmatpush1.msra.mxu0 0.0
        %1283 = vmatprep.mubr.f32.mxu0 0.0
        %1284 = vmatmul.mubr.f32.gmra.mrb[0].mxu0 %v1217
        %v1285 = vpop.f32.mrb[0].mxu0
        %v1286 = vadd.f32 0.0, %v1285
        %v1287 = vpop.f32.mrb[0].mxu0
        %1288 = vdwg.mxu0
        %1289 = vst.msk [vmem:[%s297] sm:$0xff] %vm303, %v1286
        %s1290 = sand.u32 %s142, 1
        %s1291 = scalar_lea.sflag [#allocation5], %s1290
        %s1292 = sand.u32 %s142, 1
        %s1293 = smul.addr %s1292, 8
        %s1294 = scalar_lea.vmem [#allocation12], %s1293
        // Predicated region
        $region61: #{tpu_custom_call.1} parent=39 // pred_check
          %p1295 = pneg %p152
        $region62: #{tpu_custom_call.1} parent=39 // pred_check_branch
          %1297 = sbr.rel (%p1295) target = $region64
        $region63: #{tpu_custom_call.1} parent=39 // pred_region
          %s1299 = ssub.s32 128, 128
          %1300 = vsyncadd %s1291, %s1299
          %s1301 = smul.addr %s24, 128
          %s1302 = scalar_lea.hbm %s5, %s1301
          %s1304 = sshll.u32 %s1294, 4
          %s1305 = int_to_ptr.vmem [resolvable:$true] %s1304
          %1307 = dma.vmem_to_hbm [thread:$0]  %s1305, 128, %s1302, %s1291
        $region64: #{tpu_custom_call.1} parent=39 // pred_fallthru
          _
      $region40: #{tpu_custom_call.1} parent=5 // pred_fallthru
        _
      %p1308 = scmp.le.s32.totalorder 2, %s19
      // Predicated region
      $region65: #{tpu_custom_call.1} parent=5 // pred_check
        %p1309 = pneg %p1308
      $region66: #{tpu_custom_call.1} parent=5 // pred_check_branch
        %1311 = sbr.rel (%p1309) target = $region68
      $region67: #{tpu_custom_call.1} parent=5 // pred_region
        %s1312 = ssub.s32 %s19, 2
        // Predicated region
        $region69: #{tpu_custom_call.1} parent=67 // pred_check
          %p1313 = pneg %p158
        $region70: #{tpu_custom_call.1} parent=67 // pred_check_branch
          %1315 = sbr.rel (%p1313) target = $region72
        $region71: #{tpu_custom_call.1} parent=67 // pred_region
          %s1316 = sand.u32 %s143, 1
          %s1317 = scalar_lea.sflag [#allocation5], %s1316
          %s1318 = sand.u32 %s143, 1
          %s1319 = smul.addr %s1318, 8
          %s1320 = scalar_lea.vmem [#allocation12], %s1319
          %1321 = dma.done %s1317, 128
        $region72: #{tpu_custom_call.1} parent=67 // pred_fallthru
          _
      $region68: #{tpu_custom_call.1} parent=5 // pred_fallthru
        _
    $region6: #{tpu_custom_call.1} parent=1 // loop_footer
      %s23 = sadd.s32 1, %s19
    $region7: #{tpu_custom_call.1} parent=1 // loop_footer_branch
      %18 = sbr.rel target = $region3
    $region8: #{tpu_custom_call.1} parent=1 // loop_exit
      _
    %1322 = vsyncpa [#allocation4], 1
    %s1323 = scalar_lea.sflag [#allocation4], 1
    %1324 = vsyncpa %s1323, 1
    %1325 = vsyncpa [#allocation7], 1
    %1326 = vsyncpa [#allocation10], 1
    %1327 = vsyncpa [#allocation5], 1
    %s1328 = scalar_lea.sflag [#allocation5], 1
    %1329 = vsyncpa %s1328, 1

</llo_original>
